<compile_context>
chip_gen: v7x
topology: tpu7x:2x2x1
jax: 0.10.0
libtpu: 0.0.40
codegen_flags: <defaults>
</compile_context>

<pallas_src>
import functools

import jax
import jax.numpy as jnp
from jax import lax
from jax.experimental import pallas as pl
from jax.experimental.pallas import tpu as pltpu


# ----------------------------- tiling helpers ------------------------------ #

def _pick_tile(dim, target, align):
    """Largest t <= target with t % align == 0 and dim % t == 0; else full dim
    (full-extent blocks are always legal under the (8,128) block rule)."""
    if dim <= target:
        return dim
    t = (target // align) * align
    while t >= align:
        if dim % t == 0:
            return t
        t -= align
    return dim


def _compiler_params(dim_sems, buffer_bytes):
    # Scoped-VMEM limit derived from the double-buffered tile footprint,
    # capped well below v7x's 64 MiB physical VMEM.
    need = int(sum(2 * int(b) for b in buffer_bytes)) + (4 << 20)
    limit = max(16 << 20, min(need, 48 << 20))
    return pltpu.CompilerParams(dimension_semantics=dim_sems,
                                vmem_limit_bytes=limit)


# ----------------------------- linear kernels ------------------------------ #

def _make_linear_kernel(with_bias):
    if with_bias:
        def kernel(x_ref, w_ref, b_ref, o_ref, acc_ref):
            @pl.when(pl.program_id(2) == 0)
            def _():
                acc_ref[...] = jnp.zeros_like(acc_ref)

            acc_ref[...] += jnp.dot(x_ref[...], w_ref[...],
                                    preferred_element_type=jnp.float32)

            @pl.when(pl.program_id(2) == pl.num_programs(2) - 1)
            def _():
                # Bias add fused into the final-k writeback (one VPU pass).
                o_ref[...] = (acc_ref[...] + b_ref[...]).astype(o_ref.dtype)
    else:
        def kernel(x_ref, w_ref, o_ref, acc_ref):
            @pl.when(pl.program_id(2) == 0)
            def _():
                acc_ref[...] = jnp.zeros_like(acc_ref)

            acc_ref[...] += jnp.dot(x_ref[...], w_ref[...],
                                    preferred_element_type=jnp.float32)

            @pl.when(pl.program_id(2) == pl.num_programs(2) - 1)
            def _():
                o_ref[...] = acc_ref[...].astype(o_ref.dtype)
    return kernel


def pallas_linear(x2d, w, b=None, *, tm=256, tn=256, tk=512):
    """y = x2d @ w (+ b), tiled over (M, N, K) with an f32 accumulator."""
    M, K = x2d.shape
    Kw, N = w.shape
    assert K == Kw
    tm = _pick_tile(M, tm, 8)
    tn = _pick_tile(N, tn, 128)
    tk = _pick_tile(K, tk, 128)
    grid = (M // tm, N // tn, K // tk)
    itemsize = x2d.dtype.itemsize

    in_specs = [
        pl.BlockSpec((tm, tk), lambda i, j, k: (i, k)),
        pl.BlockSpec((tk, tn), lambda i, j, k: (k, j)),
    ]
    operands = [x2d, w]
    buf_bytes = [tm * tk * itemsize, tk * tn * itemsize, tm * tn * itemsize,
                 tm * tn * 4]
    if b is not None:
        in_specs.append(pl.BlockSpec((1, tn), lambda i, j, k: (0, j)))
        operands.append(b.reshape(1, N))
        buf_bytes.append(tn * itemsize)

    cost = pl.CostEstimate(
        flops=2 * M * N * K,
        transcendentals=0,
        bytes_accessed=(M * K + K * N + M * N
                        + (N if b is not None else 0)) * itemsize,
    )
    return pl.pallas_call(
        _make_linear_kernel(b is not None),
        out_shape=jax.ShapeDtypeStruct((M, N), x2d.dtype),
        grid=grid,
        in_specs=in_specs,
        out_specs=pl.BlockSpec((tm, tn), lambda i, j, k: (i, j)),
        scratch_shapes=[pltpu.VMEM((tm, tn), jnp.float32)],
        compiler_params=_compiler_params(("parallel", "parallel", "arbitrary"),
                                         buf_bytes),
        cost_estimate=cost,
    )(*operands)


# ----------------------------- flash attention ----------------------------- #

def _make_flash_kernel(heads_in_group, dim_head, scale):
    G, Dh = heads_in_group, dim_head

    def kernel(q_ref, k_ref, v_ref, o_ref, m_ref, l_ref, acc_ref):
        ki = pl.program_id(3)

        @pl.when(ki == 0)
        def _():
            m_ref[...] = jnp.full_like(m_ref, -jnp.inf)
            l_ref[...] = jnp.zeros_like(l_ref)
            acc_ref[...] = jnp.zeros_like(acc_ref)

        # Static unroll over the heads packed in this group's feature window.
        for h in range(G):
            lo = h * Dh
            # Scale Q (tq x Dh elements) instead of the (tq x tk) scores.
            qh = q_ref[0, :, lo:lo + Dh] * scale        # (tq, Dh)
            kh = k_ref[0, :, lo:lo + Dh]                # (tk, Dh)
            vh = v_ref[0, :, lo:lo + Dh]                # (tk, Dh)

            # Contract the last dim of both operands: no explicit K transpose.
            s = lax.dot_general(qh, kh, (((1,), (1,)), ((), ())),
                                preferred_element_type=jnp.float32)  # (tq, tk)

            m_prev = m_ref[h]                           # (tq, 1)
            m_new = jnp.maximum(m_prev, jnp.max(s, axis=-1, keepdims=True))
            alpha = jnp.exp(m_prev - m_new)
            p = jnp.exp(s - m_new)                      # (tq, tk) f32
            l_ref[h] = alpha * l_ref[h] + jnp.sum(p, axis=-1, keepdims=True)
            acc_ref[h] = alpha * acc_ref[h] + lax.dot_general(
                p.astype(vh.dtype), vh, (((1,), (0,)), ((), ())),
                preferred_element_type=jnp.float32)
            m_ref[h] = m_new

        @pl.when(ki == pl.num_programs(3) - 1)
        def _():
            for h in range(G):
                lo = h * Dh
                o_ref[0, :, lo:lo + Dh] = (
                    acc_ref[h] * pl.reciprocal(l_ref[h], approx=True)
                ).astype(o_ref.dtype)

    return kernel


def _head_group(heads, dim_head, target_width=512):
    """Largest divisor g of heads with (g*dim_head) % 128 == 0, preferring
    g*dim_head <= target_width.  None if the hidden width is not 128-aligned."""
    cands = [g for g in range(1, heads + 1)
             if heads % g == 0 and (g * dim_head) % 128 == 0]
    if not cands:
        return None
    small = [g for g in cands if g * dim_head <= target_width]
    return max(small) if small else min(cands)


def pallas_attention(q, kv, *, heads, dim_head, tq=256, tk=512):
    """out = softmax(q k^T / sqrt(dim_head)) v per head (flash-style KV tiling).

    q : (B, T, heads*dim_head)   -- heads packed along the feature axis
    kv: (B, T, 2*heads*dim_head) -- [K | V] packed along the feature axis
    returns (B, T, heads*dim_head)
    """
    B, T, hidden = q.shape
    H, Dh = heads, dim_head
    assert hidden == H * Dh and kv.shape == (B, T, 2 * hidden)

    g = _head_group(H, Dh)
    tq = _pick_tile(T, tq, 8)
    tk = _pick_tile(T, tk, 8)

    if g is not None:
        gw = g * Dh
        n_hg = H // g
        k_arr, v_arr = kv, kv            # K / V selected purely via index_map
        k_off, v_off = 0, n_hg
    else:
        # hidden not 128-aligned: fall back to an XLA-side K/V split and
        # full-width (== hidden) blocks, also legal under the block rule.
        g, gw, n_hg = H, hidden, 1
        k_arr, v_arr = kv[..., :hidden], kv[..., hidden:]
        k_off, v_off = 0, 0

    grid = (B, n_hg, T // tq, T // tk)
    scale = float(Dh) ** -0.5
    itemsize = q.dtype.itemsize

    q_spec = pl.BlockSpec((1, tq, gw), lambda b, hg, qi, ki: (b, qi, hg))
    k_spec = pl.BlockSpec((1, tk, gw), lambda b, hg, qi, ki: (b, ki, k_off + hg))
    v_spec = pl.BlockSpec((1, tk, gw), lambda b, hg, qi, ki: (b, ki, v_off + hg))
    o_spec = pl.BlockSpec((1, tq, gw), lambda b, hg, qi, ki: (b, qi, hg))

    cost = pl.CostEstimate(
        flops=4 * B * H * T * T * Dh,
        transcendentals=B * H * T * T,
        bytes_accessed=(2 * q.size + kv.size) * itemsize,
    )
    buf_bytes = [tq * gw * itemsize, 2 * tk * gw * itemsize,
                 tq * gw * itemsize, g * tq * (Dh + 2) * 4]

    return pl.pallas_call(
        _make_flash_kernel(g, Dh, scale),
        out_shape=jax.ShapeDtypeStruct((B, T, hidden), q.dtype),
        grid=grid,
        in_specs=[q_spec, k_spec, v_spec],
        out_specs=o_spec,
        scratch_shapes=[
            pltpu.VMEM((g, tq, 1), jnp.float32),    # running max  m
            pltpu.VMEM((g, tq, 1), jnp.float32),    # running sum  l
            pltpu.VMEM((g, tq, Dh), jnp.float32),   # f32 output accumulator
        ],
        compiler_params=_compiler_params(
            ("parallel", "parallel", "parallel", "arbitrary"), buf_bytes),
        cost_estimate=cost,
    )(q, k_arr, v_arr)


# ----------------------------- forward pass -------------------------------- #

def attention_forward(x, params, *, heads, dim_head):
    """Equivalent of Attention.forward(q=x, kv=None, mask=None)."""
    # TODO(synk): attn_mask path (mask is not None) not implemented; module default is mask=None.
    B, T, D = x.shape
    hidden = heads * dim_head
    x2d = x.reshape(B * T, D)

    # Projections (no bias).  All reshapes below are contiguity-preserving:
    # no XLA transposes anywhere in the forward pass.
    q = pallas_linear(x2d, params["w_q"]).reshape(B, T, hidden)
    kv = pallas_linear(x2d, params["w_kv"]).reshape(B, T, 2 * hidden)

    o = pallas_attention(q, kv, heads=heads, dim_head=dim_head)  # (B,T,hidden)

    y2d = pallas_linear(o.reshape(B * T, hidden),
                        params["w_out"], params["b_out"])
    return y2d.reshape(B, T, D)


# ----------------------------- setup / reference --------------------------- #

def init_params(key, dim, heads, dim_head, conditiondim=None):
    if conditiondim is None:
        conditiondim = dim
    hidden = heads * dim_head
    k1, k2, k3, k4 = jax.random.split(key, 4)

    def uni(k, shape, fan_in):
        bound = 1.0 / (fan_in ** 0.5)
        return jax.random.uniform(k, shape, jnp.float32, -bound, bound)

    return {
        "w_q":   uni(k1, (dim, hidden), dim),                        # to_q
        "w_kv":  uni(k2, (conditiondim, 2 * hidden), conditiondim),  # to_kv
        "w_out": uni(k3, (hidden, dim), hidden),                     # to_out W
        "b_out": uni(k4, (dim,), hidden),                            # to_out b
    }


def _reference(x, params, *, heads, dim_head):
    B, T, D = x.shape
    hidden = heads * dim_head
    q = x @ params["w_q"]
    kvp = x @ params["w_kv"]
    k, v = kvp[..., :hidden], kvp[..., hidden:]

    def sh(t):
        return t.reshape(B, T, heads, dim_head).transpose(0, 2, 1, 3)

    q, k, v = sh(q), sh(k), sh(v)
    s = jnp.einsum("bhtc,bhsc->bhts", q, k) / (dim_head ** 0.5)
    p = jax.nn.softmax(s, axis=-1)
    o = jnp.einsum("bhts,bhsc->bhtc", p, v)
    o = o.transpose(0, 2, 1, 3).reshape(B, T, hidden)
    return o @ params["w_out"] + params["b_out"]


# ----------------------------- main ---------------------------------------- #

if __name__ == "__main__":
    B, T, DIM = 2, 8, 32
    HEADS, DIM_HEAD = 4, 32           # hidden = 128 (lane-dense blocks)

    key = jax.random.PRNGKey(0)
    kx, kp = jax.random.split(key)
    x = jax.random.normal(kx, (B, T, DIM), jnp.float32)
    params = init_params(kp, DIM, HEADS, DIM_HEAD)

    fwd = jax.jit(functools.partial(attention_forward,
                                    heads=HEADS, dim_head=DIM_HEAD))
    out = jax.block_until_ready(fwd(x, params))

    ref = _reference(x, params, heads=HEADS, dim_head=DIM_HEAD)
    assert out.shape == (B, T, DIM)
    # Tolerance accommodates the EUP approximate reciprocal in the softmax
    # normalization (pl.reciprocal(..., approx=True)).
    assert jnp.allclose(out, ref, atol=2e-2, rtol=2e-2), "mismatch vs JAX reference"

    print("KERNEL_OK")
</pallas_src>

<mosaic_0001>
module attributes {stable_mosaic.version = 11 : i64} {
  func.func @kernel(%arg0: i32, %arg1: i32, %arg2: i32, %arg3: memref<16x32xf32, #tpu.memory_space<vmem>>, %arg4: memref<32x128xf32, #tpu.memory_space<vmem>>, %arg5: memref<16x128xf32, #tpu.memory_space<vmem>>, %arg6: memref<16x128xf32, #tpu.memory_space<vmem>>) attributes {dimension_semantics = [#tpu.dimension_semantics<parallel>, #tpu.dimension_semantics<parallel>, #tpu.dimension_semantics<arbitrary>], iteration_bounds = array<i64: 1, 1, 1>, scalar_prefetch = 0 : i64, scratch_operands = 1 : i64, tpu.core_type = #tpu.core_type<tc>, window_params = [{transform_indices = @transform_0, window_bounds = array<i64: 16, 32>}, {transform_indices = @transform_1, window_bounds = array<i64: 32, 128>}, {transform_indices = @transform_2, window_bounds = array<i64: 16, 128>}]} {
    %c0_i32 = arith.constant 0 : i32
    %0 = arith.cmpi eq, %arg2, %c0_i32 : i32
    %1 = arith.extui %0 : i1 to i32
    %c0_i32_0 = arith.constant 0 : i32
    %2 = arith.cmpi ne, %1, %c0_i32_0 : i32
    scf.if %2 {
      %cst_10 = arith.constant 0.000000e+00 : f32
      %12 = vector.broadcast %cst_10 : f32 to vector<16x128xf32>
      %c0_11 = arith.constant 0 : index
      %c0_12 = arith.constant 0 : index
      %13 = vector.load %arg6[%c0_11, %c0_12] : memref<16x128xf32, #tpu.memory_space<vmem>>, vector<16x128xf32>
      tpu.vector_store %arg6[%c0_11, %c0_12], %12 {strides = array<i32>} : memref<16x128xf32, #tpu.memory_space<vmem>>, vector<16x128xf32>,
    } else {
    }
    %c0 = arith.constant 0 : index
    %c0_1 = arith.constant 0 : index
    %3 = vector.load %arg6[%c0, %c0_1] : memref<16x128xf32, #tpu.memory_space<vmem>>, vector<16x128xf32>
    %c0_2 = arith.constant 0 : index
    %c0_3 = arith.constant 0 : index
    %4 = vector.load %arg3[%c0_2, %c0_3] : memref<16x32xf32, #tpu.memory_space<vmem>>, vector<16x32xf32>
    %c0_4 = arith.constant 0 : index
    %c0_5 = arith.constant 0 : index
    %5 = vector.load %arg4[%c0_4, %c0_5] : memref<32x128xf32, #tpu.memory_space<vmem>>, vector<32x128xf32>
    %cst = arith.constant dense<0.000000e+00> : vector<16x128xf32>
    %6 = tpu.matmul %4, %5, %cst {dimension_numbers = #tpu.dot_dimension_numbers<[1], [0], [0], [1], [0, 0, 1, 1], [], []>} : vector<16x32xf32>, vector<32x128xf32>, vector<16x128xf32> -> vector<16x128xf32>
    %7 = arith.addf %3, %6 : vector<16x128xf32>
    %c0_6 = arith.constant 0 : index
    %c0_7 = arith.constant 0 : index
    %8 = vector.load %arg6[%c0_6, %c0_7] : memref<16x128xf32, #tpu.memory_space<vmem>>, vector<16x128xf32>
    tpu.vector_store %arg6[%c0_6, %c0_7], %7 {strides = array<i32>} : memref<16x128xf32, #tpu.memory_space<vmem>>, vector<16x128xf32>,
    %c0_i32_8 = arith.constant 0 : i32
    %9 = arith.cmpi eq, %arg2, %c0_i32_8 : i32
    %10 = arith.extui %9 : i1 to i32
    %c0_i32_9 = arith.constant 0 : i32
    %11 = arith.cmpi ne, %10, %c0_i32_9 : i32
    scf.if %11 {
      %c0_10 = arith.constant 0 : index
      %c0_11 = arith.constant 0 : index
      %12 = vector.load %arg6[%c0_10, %c0_11] : memref<16x128xf32, #tpu.memory_space<vmem>>, vector<16x128xf32>
      %c0_12 = arith.constant 0 : index
      %c0_13 = arith.constant 0 : index
      %13 = vector.load %arg5[%c0_12, %c0_13] : memref<16x128xf32, #tpu.memory_space<vmem>>, vector<16x128xf32>
      tpu.vector_store %arg5[%c0_12, %c0_13], %12 {strides = array<i32>} : memref<16x128xf32, #tpu.memory_space<vmem>>, vector<16x128xf32>,
    } else {
    }
    return
  }
  func.func @transform_0(%arg0: i32, %arg1: i32, %arg2: i32) -> (i32, i32) {
    %c0_i32 = arith.constant 0 : i32
    return %arg0, %arg2 : i32, i32
  }
  func.func @transform_1(%arg0: i32, %arg1: i32, %arg2: i32) -> (i32, i32) {
    %c0_i32 = arith.constant 0 : i32
    return %arg2, %arg1 : i32, i32
  }
  func.func @transform_2(%arg0: i32, %arg1: i32, %arg2: i32) -> (i32, i32) {
    %c0_i32 = arith.constant 0 : i32
    return %arg0, %arg1 : i32, i32
  }
}

module attributes {stable_mosaic.version = 11 : i64} {
  func.func @kernel(%arg0: i32, %arg1: i32, %arg2: i32, %arg3: i32, %arg4: memref<1x8x128xf32, #tpu.memory_space<vmem>>, %arg5: memref<1x8x128xf32, #tpu.memory_space<vmem>>, %arg6: memref<1x8x128xf32, #tpu.memory_space<vmem>>, %arg7: memref<1x8x128xf32, #tpu.memory_space<vmem>>, %arg8: memref<4x8x1xf32, #tpu.memory_space<vmem>>, %arg9: memref<4x8x1xf32, #tpu.memory_space<vmem>>, %arg10: memref<4x8x32xf32, #tpu.memory_space<vmem>>) attributes {dimension_semantics = [#tpu.dimension_semantics<parallel>, #tpu.dimension_semantics<parallel>, #tpu.dimension_semantics<parallel>, #tpu.dimension_semantics<arbitrary>], iteration_bounds = array<i64: 2, 1, 1, 1>, scalar_prefetch = 0 : i64, scratch_operands = 3 : i64, tpu.core_type = #tpu.core_type<tc>, window_params = [{transform_indices = @transform_0, window_bounds = array<i64: 1, 8, 128>}, {transform_indices = @transform_1, window_bounds = array<i64: 1, 8, 128>}, {transform_indices = @transform_2, window_bounds = array<i64: 1, 8, 128>}, {transform_indices = @transform_3, window_bounds = array<i64: 1, 8, 128>}]} {
    %c0_i32 = arith.constant 0 : i32
    %0 = arith.cmpi eq, %arg3, %c0_i32 : i32
    %1 = arith.extui %0 : i1 to i32
    %c0_i32_0 = arith.constant 0 : i32
    %2 = arith.cmpi ne, %1, %c0_i32_0 : i32
    scf.if %2 {
      %cst_123 = arith.constant 0xFF800000 : f32
      %166 = vector.broadcast %cst_123 : f32 to vector<4x8x1xf32>
      %c0_124 = arith.constant 0 : index
      %c0_125 = arith.constant 0 : index
      %c0_126 = arith.constant 0 : index
      %167 = vector.load %arg8[%c0_124, %c0_125, %c0_126] : memref<4x8x1xf32, #tpu.memory_space<vmem>>, vector<4x8x1xf32>
      tpu.vector_store %arg8[%c0_124, %c0_125, %c0_126], %166 {strides = array<i32>} : memref<4x8x1xf32, #tpu.memory_space<vmem>>, vector<4x8x1xf32>,
      %cst_127 = arith.constant 0.000000e+00 : f32
      %168 = vector.broadcast %cst_127 : f32 to vector<4x8x1xf32>
      %c0_128 = arith.constant 0 : index
      %c0_129 = arith.constant 0 : index
      %c0_130 = arith.constant 0 : index
      %169 = vector.load %arg9[%c0_128, %c0_129, %c0_130] : memref<4x8x1xf32, #tpu.memory_space<vmem>>, vector<4x8x1xf32>
      tpu.vector_store %arg9[%c0_128, %c0_129, %c0_130], %168 {strides = array<i32>} : memref<4x8x1xf32, #tpu.memory_space<vmem>>, vector<4x8x1xf32>,
      %cst_131 = arith.constant 0.000000e+00 : f32
      %170 = vector.broadcast %cst_131 : f32 to vector<4x8x32xf32>
      %c0_132 = arith.constant 0 : index
      %c0_133 = arith.constant 0 : index
      %c0_134 = arith.constant 0 : index
      %171 = vector.load %arg10[%c0_132, %c0_133, %c0_134] : memref<4x8x32xf32, #tpu.memory_space<vmem>>, vector<4x8x32xf32>
      tpu.vector_store %arg10[%c0_132, %c0_133, %c0_134], %170 {strides = array<i32>} : memref<4x8x32xf32, #tpu.memory_space<vmem>>, vector<4x8x32xf32>,
    } else {
    }
    %c0 = arith.constant 0 : index
    %c0_1 = arith.constant 0 : index
    %c0_2 = arith.constant 0 : index
    %3 = vector.load %arg4[%c0, %c0_1, %c0_2] : memref<1x8x128xf32, #tpu.memory_space<vmem>>, vector<1x8x32xf32>
    %4 = vector.shape_cast %3 : vector<1x8x32xf32> to vector<8x32xf32>
    %cst = arith.constant 0.176776692 : f32
    %5 = vector.broadcast %cst : f32 to vector<8x32xf32>
    %6 = arith.mulf %4, %5 : vector<8x32xf32>
    %c0_3 = arith.constant 0 : index
    %c0_4 = arith.constant 0 : index
    %c0_5 = arith.constant 0 : index
    %7 = vector.load %arg5[%c0_3, %c0_4, %c0_5] : memref<1x8x128xf32, #tpu.memory_space<vmem>>, vector<1x8x32xf32>
    %8 = vector.shape_cast %7 : vector<1x8x32xf32> to vector<8x32xf32>
    %c0_6 = arith.constant 0 : index
    %c0_7 = arith.constant 0 : index
    %c0_8 = arith.constant 0 : index
    %9 = vector.load %arg6[%c0_6, %c0_7, %c0_8] : memref<1x8x128xf32, #tpu.memory_space<vmem>>, vector<1x8x32xf32>
    %10 = vector.shape_cast %9 : vector<1x8x32xf32> to vector<8x32xf32>
    %cst_9 = arith.constant dense<0.000000e+00> : vector<8x8xf32>
    %11 = tpu.matmul %6, %8, %cst_9 {dimension_numbers = #tpu.dot_dimension_numbers<[1], [1], [0], [0], [0, 0, 1, 0], [], []>} : vector<8x32xf32>, vector<8x32xf32>, vector<8x8xf32> -> vector<8x8xf32>
    %c0_10 = arith.constant 0 : index
    %c0_11 = arith.constant 0 : index
    %c0_12 = arith.constant 0 : index
    %12 = vector.load %arg8[%c0_10, %c0_11, %c0_12] : memref<4x8x1xf32, #tpu.memory_space<vmem>>, vector<1x8x1xf32>
    %13 = vector.shape_cast %12 : vector<1x8x1xf32> to vector<8x1xf32>
    %cst_13 = arith.constant dense<0xFF800000> : vector<8xf32>
    %14 = vector.multi_reduction <maximumf>, %11, %cst_13 [1] : vector<8x8xf32> to vector<8xf32>
    %15 = vector.shape_cast %14 : vector<8xf32> to vector<8x1xf32>
    %16 = arith.maximumf %13, %15 : vector<8x1xf32>
    %17 = arith.subf %13, %16 : vector<8x1xf32>
    %18 = math.exp %17 : vector<8x1xf32>
    %19 = vector.broadcast %16 : vector<8x1xf32> to vector<8x8xf32>
    %20 = arith.subf %11, %19 : vector<8x8xf32>
    %21 = math.exp %20 : vector<8x8xf32>
    %c0_14 = arith.constant 0 : index
    %c0_15 = arith.constant 0 : index
    %c0_16 = arith.constant 0 : index
    %22 = vector.load %arg9[%c0_14, %c0_15, %c0_16] : memref<4x8x1xf32, #tpu.memory_space<vmem>>, vector<1x8x1xf32>
    %23 = vector.shape_cast %22 : vector<1x8x1xf32> to vector<8x1xf32>
    %24 = arith.mulf %18, %23 : vector<8x1xf32>
    %cst_17 = arith.constant dense<0.000000e+00> : vector<8xf32>
    %25 = vector.multi_reduction <add>, %21, %cst_17 [1] : vector<8x8xf32> to vector<8xf32>
    %26 = vector.shape_cast %25 : vector<8xf32> to vector<8x1xf32>
    %27 = arith.addf %24, %26 : vector<8x1xf32>
    %c0_18 = arith.constant 0 : index
    %c0_19 = arith.constant 0 : index
    %c0_20 = arith.constant 0 : index
    %28 = vector.load %arg9[%c0_18, %c0_19, %c0_20] : memref<4x8x1xf32, #tpu.memory_space<vmem>>, vector<1x8x1xf32>
    %29 = vector.shape_cast %28 : vector<1x8x1xf32> to vector<8x1xf32>
    %30 = vector.shape_cast %27 : vector<8x1xf32> to vector<1x8x1xf32>
    tpu.vector_store %arg9[%c0_18, %c0_19, %c0_20], %30 {strides = array<i32>} : memref<4x8x1xf32, #tpu.memory_space<vmem>>, vector<1x8x1xf32>,
    %c0_21 = arith.constant 0 : index
    %c0_22 = arith.constant 0 : index
    %c0_23 = arith.constant 0 : index
    %31 = vector.load %arg10[%c0_21, %c0_22, %c0_23] : memref<4x8x32xf32, #tpu.memory_space<vmem>>, vector<1x8x32xf32>
    %32 = vector.shape_cast %31 : vector<1x8x32xf32> to vector<8x32xf32>
    %33 = vector.broadcast %18 : vector<8x1xf32> to vector<8x32xf32>
    %34 = arith.mulf %33, %32 : vector<8x32xf32>
    %cst_24 = arith.constant dense<0.000000e+00> : vector<8x32xf32>
    %35 = tpu.matmul %21, %10, %cst_24 {dimension_numbers = #tpu.dot_dimension_numbers<[1], [0], [0], [1], [0, 0, 1, 1], [], []>} : vector<8x8xf32>, vector<8x32xf32>, vector<8x32xf32> -> vector<8x32xf32>
    %36 = arith.addf %34, %35 : vector<8x32xf32>
    %c0_25 = arith.constant 0 : index
    %c0_26 = arith.constant 0 : index
    %c0_27 = arith.constant 0 : index
    %37 = vector.load %arg10[%c0_25, %c0_26, %c0_27] : memref<4x8x32xf32, #tpu.memory_space<vmem>>, vector<1x8x32xf32>
    %38 = vector.shape_cast %37 : vector<1x8x32xf32> to vector<8x32xf32>
    %39 = vector.shape_cast %36 : vector<8x32xf32> to vector<1x8x32xf32>
    tpu.vector_store %arg10[%c0_25, %c0_26, %c0_27], %39 {strides = array<i32>} : memref<4x8x32xf32, #tpu.memory_space<vmem>>, vector<1x8x32xf32>,
    %c0_28 = arith.constant 0 : index
    %c0_29 = arith.constant 0 : index
    %c0_30 = arith.constant 0 : index
    %40 = vector.load %arg8[%c0_28, %c0_29, %c0_30] : memref<4x8x1xf32, #tpu.memory_space<vmem>>, vector<1x8x1xf32>
    %41 = vector.shape_cast %40 : vector<1x8x1xf32> to vector<8x1xf32>
    %42 = vector.shape_cast %16 : vector<8x1xf32> to vector<1x8x1xf32>
    tpu.vector_store %arg8[%c0_28, %c0_29, %c0_30], %42 {strides = array<i32>} : memref<4x8x1xf32, #tpu.memory_space<vmem>>, vector<1x8x1xf32>,
    %c0_31 = arith.constant 0 : index
    %c0_32 = arith.constant 0 : index
    %c32 = arith.constant 32 : index
    %43 = vector.load %arg4[%c0_31, %c0_32, %c32] : memref<1x8x128xf32, #tpu.memory_space<vmem>>, vector<1x8x32xf32>
    %44 = vector.shape_cast %43 : vector<1x8x32xf32> to vector<8x32xf32>
    %cst_33 = arith.constant 0.176776692 : f32
    %45 = vector.broadcast %cst_33 : f32 to vector<8x32xf32>
    %46 = arith.mulf %44, %45 : vector<8x32xf32>
    %c0_34 = arith.constant 0 : index
    %c0_35 = arith.constant 0 : index
    %c32_36 = arith.constant 32 : index
    %47 = vector.load %arg5[%c0_34, %c0_35, %c32_36] : memref<1x8x128xf32, #tpu.memory_space<vmem>>, vector<1x8x32xf32>
    %48 = vector.shape_cast %47 : vector<1x8x32xf32> to vector<8x32xf32>
    %c0_37 = arith.constant 0 : index
    %c0_38 = arith.constant 0 : index
    %c32_39 = arith.constant 32 : index
    %49 = vector.load %arg6[%c0_37, %c0_38, %c32_39] : memref<1x8x128xf32, #tpu.memory_space<vmem>>, vector<1x8x32xf32>
    %50 = vector.shape_cast %49 : vector<1x8x32xf32> to vector<8x32xf32>
    %cst_40 = arith.constant dense<0.000000e+00> : vector<8x8xf32>
    %51 = tpu.matmul %46, %48, %cst_40 {dimension_numbers = #tpu.dot_dimension_numbers<[1], [1], [0], [0], [0, 0, 1, 0], [], []>} : vector<8x32xf32>, vector<8x32xf32>, vector<8x8xf32> -> vector<8x8xf32>
    %c1 = arith.constant 1 : index
    %c0_41 = arith.constant 0 : index
    %c0_42 = arith.constant 0 : index
    %52 = vector.load %arg8[%c1, %c0_41, %c0_42] : memref<4x8x1xf32, #tpu.memory_space<vmem>>, vector<1x8x1xf32>
    %53 = vector.shape_cast %52 : vector<1x8x1xf32> to vector<8x1xf32>
    %cst_43 = arith.constant dense<0xFF800000> : vector<8xf32>
    %54 = vector.multi_reduction <maximumf>, %51, %cst_43 [1] : vector<8x8xf32> to vector<8xf32>
    %55 = vector.shape_cast %54 : vector<8xf32> to vector<8x1xf32>
    %56 = arith.maximumf %53, %55 : vector<8x1xf32>
    %57 = arith.subf %53, %56 : vector<8x1xf32>
    %58 = math.exp %57 : vector<8x1xf32>
    %59 = vector.broadcast %56 : vector<8x1xf32> to vector<8x8xf32>
    %60 = arith.subf %51, %59 : vector<8x8xf32>
    %61 = math.exp %60 : vector<8x8xf32>
    %c1_44 = arith.constant 1 : index
    %c0_45 = arith.constant 0 : index
    %c0_46 = arith.constant 0 : index
    %62 = vector.load %arg9[%c1_44, %c0_45, %c0_46] : memref<4x8x1xf32, #tpu.memory_space<vmem>>, vector<1x8x1xf32>
    %63 = vector.shape_cast %62 : vector<1x8x1xf32> to vector<8x1xf32>
    %64 = arith.mulf %58, %63 : vector<8x1xf32>
    %cst_47 = arith.constant dense<0.000000e+00> : vector<8xf32>
    %65 = vector.multi_reduction <add>, %61, %cst_47 [1] : vector<8x8xf32> to vector<8xf32>
    %66 = vector.shape_cast %65 : vector<8xf32> to vector<8x1xf32>
    %67 = arith.addf %64, %66 : vector<8x1xf32>
    %c1_48 = arith.constant 1 : index
    %c0_49 = arith.constant 0 : index
    %c0_50 = arith.constant 0 : index
    %68 = vector.load %arg9[%c1_48, %c0_49, %c0_50] : memref<4x8x1xf32, #tpu.memory_space<vmem>>, vector<1x8x1xf32>
    %69 = vector.shape_cast %68 : vector<1x8x1xf32> to vector<8x1xf32>
    %70 = vector.shape_cast %67 : vector<8x1xf32> to vector<1x8x1xf32>
    tpu.vector_store %arg9[%c1_48, %c0_49, %c0_50], %70 {strides = array<i32>} : memref<4x8x1xf32, #tpu.memory_space<vmem>>, vector<1x8x1xf32>,
    %c1_51 = arith.constant 1 : index
    %c0_52 = arith.constant 0 : index
    %c0_53 = arith.constant 0 : index
    %71 = vector.load %arg10[%c1_51, %c0_52, %c0_53] : memref<4x8x32xf32, #tpu.memory_space<vmem>>, vector<1x8x32xf32>
    %72 = vector.shape_cast %71 : vector<1x8x32xf32> to vector<8x32xf32>
    %73 = vector.broadcast %58 : vector<8x1xf32> to vector<8x32xf32>
    %74 = arith.mulf %73, %72 : vector<8x32xf32>
    %cst_54 = arith.constant dense<0.000000e+00> : vector<8x32xf32>
    %75 = tpu.matmul %61, %50, %cst_54 {dimension_numbers = #tpu.dot_dimension_numbers<[1], [0], [0], [1], [0, 0, 1, 1], [], []>} : vector<8x8xf32>, vector<8x32xf32>, vector<8x32xf32> -> vector<8x32xf32>
    %76 = arith.addf %74, %75 : vector<8x32xf32>
    %c1_55 = arith.constant 1 : index
    %c0_56 = arith.constant 0 : index
    %c0_57 = arith.constant 0 : index
    %77 = vector.load %arg10[%c1_55, %c0_56, %c0_57] : memref<4x8x32xf32, #tpu.memory_space<vmem>>, vector<1x8x32xf32>
    %78 = vector.shape_cast %77 : vector<1x8x32xf32> to vector<8x32xf32>
    %79 = vector.shape_cast %76 : vector<8x32xf32> to vector<1x8x32xf32>
    tpu.vector_store %arg10[%c1_55, %c0_56, %c0_57], %79 {strides = array<i32>} : memref<4x8x32xf32, #tpu.memory_space<vmem>>, vector<1x8x32xf32>,
    %c1_58 = arith.constant 1 : index
    %c0_59 = arith.constant 0 : index
    %c0_60 = arith.constant 0 : index
    %80 = vector.load %arg8[%c1_58, %c0_59, %c0_60] : memref<4x8x1xf32, #tpu.memory_space<vmem>>, vector<1x8x1xf32>
    %81 = vector.shape_cast %80 : vector<1x8x1xf32> to vector<8x1xf32>
    %82 = vector.shape_cast %56 : vector<8x1xf32> to vector<1x8x1xf32>
    tpu.vector_store %arg8[%c1_58, %c0_59, %c0_60], %82 {strides = array<i32>} : memref<4x8x1xf32, #tpu.memory_space<vmem>>, vector<1x8x1xf32>,
    %c0_61 = arith.constant 0 : index
    %c0_62 = arith.constant 0 : index
    %c64 = arith.constant 64 : index
    %83 = vector.load %arg4[%c0_61, %c0_62, %c64] : memref<1x8x128xf32, #tpu.memory_space<vmem>>, vector<1x8x32xf32>
    %84 = vector.shape_cast %83 : vector<1x8x32xf32> to vector<8x32xf32>
    %cst_63 = arith.constant 0.176776692 : f32
    %85 = vector.broadcast %cst_63 : f32 to vector<8x32xf32>
    %86 = arith.mulf %84, %85 : vector<8x32xf32>
    %c0_64 = arith.constant 0 : index
    %c0_65 = arith.constant 0 : index
    %c64_66 = arith.constant 64 : index
    %87 = vector.load %arg5[%c0_64, %c0_65, %c64_66] : memref<1x8x128xf32, #tpu.memory_space<vmem>>, vector<1x8x32xf32>
    %88 = vector.shape_cast %87 : vector<1x8x32xf32> to vector<8x32xf32>
    %c0_67 = arith.constant 0 : index
    %c0_68 = arith.constant 0 : index
    %c64_69 = arith.constant 64 : index
    %89 = vector.load %arg6[%c0_67, %c0_68, %c64_69] : memref<1x8x128xf32, #tpu.memory_space<vmem>>, vector<1x8x32xf32>
    %90 = vector.shape_cast %89 : vector<1x8x32xf32> to vector<8x32xf32>
    %cst_70 = arith.constant dense<0.000000e+00> : vector<8x8xf32>
    %91 = tpu.matmul %86, %88, %cst_70 {dimension_numbers = #tpu.dot_dimension_numbers<[1], [1], [0], [0], [0, 0, 1, 0], [], []>} : vector<8x32xf32>, vector<8x32xf32>, vector<8x8xf32> -> vector<8x8xf32>
    %c2 = arith.constant 2 : index
    %c0_71 = arith.constant 0 : index
    %c0_72 = arith.constant 0 : index
    %92 = vector.load %arg8[%c2, %c0_71, %c0_72] : memref<4x8x1xf32, #tpu.memory_space<vmem>>, vector<1x8x1xf32>
    %93 = vector.shape_cast %92 : vector<1x8x1xf32> to vector<8x1xf32>
    %cst_73 = arith.constant dense<0xFF800000> : vector<8xf32>
    %94 = vector.multi_reduction <maximumf>, %91, %cst_73 [1] : vector<8x8xf32> to vector<8xf32>
    %95 = vector.shape_cast %94 : vector<8xf32> to vector<8x1xf32>
    %96 = arith.maximumf %93, %95 : vector<8x1xf32>
    %97 = arith.subf %93, %96 : vector<8x1xf32>
    %98 = math.exp %97 : vector<8x1xf32>
    %99 = vector.broadcast %96 : vector<8x1xf32> to vector<8x8xf32>
    %100 = arith.subf %91, %99 : vector<8x8xf32>
    %101 = math.exp %100 : vector<8x8xf32>
    %c2_74 = arith.constant 2 : index
    %c0_75 = arith.constant 0 : index
    %c0_76 = arith.constant 0 : index
    %102 = vector.load %arg9[%c2_74, %c0_75, %c0_76] : memref<4x8x1xf32, #tpu.memory_space<vmem>>, vector<1x8x1xf32>
    %103 = vector.shape_cast %102 : vector<1x8x1xf32> to vector<8x1xf32>
    %104 = arith.mulf %98, %103 : vector<8x1xf32>
    %cst_77 = arith.constant dense<0.000000e+00> : vector<8xf32>
    %105 = vector.multi_reduction <add>, %101, %cst_77 [1] : vector<8x8xf32> to vector<8xf32>
    %106 = vector.shape_cast %105 : vector<8xf32> to vector<8x1xf32>
    %107 = arith.addf %104, %106 : vector<8x1xf32>
    %c2_78 = arith.constant 2 : index
    %c0_79 = arith.constant 0 : index
    %c0_80 = arith.constant 0 : index
    %108 = vector.load %arg9[%c2_78, %c0_79, %c0_80] : memref<4x8x1xf32, #tpu.memory_space<vmem>>, vector<1x8x1xf32>
    %109 = vector.shape_cast %108 : vector<1x8x1xf32> to vector<8x1xf32>
    %110 = vector.shape_cast %107 : vector<8x1xf32> to vector<1x8x1xf32>
    tpu.vector_store %arg9[%c2_78, %c0_79, %c0_80], %110 {strides = array<i32>} : memref<4x8x1xf32, #tpu.memory_space<vmem>>, vector<1x8x1xf32>,
    %c2_81 = arith.constant 2 : index
    %c0_82 = arith.constant 0 : index
    %c0_83 = arith.constant 0 : index
    %111 = vector.load %arg10[%c2_81, %c0_82, %c0_83] : memref<4x8x32xf32, #tpu.memory_space<vmem>>, vector<1x8x32xf32>
    %112 = vector.shape_cast %111 : vector<1x8x32xf32> to vector<8x32xf32>
    %113 = vector.broadcast %98 : vector<8x1xf32> to vector<8x32xf32>
    %114 = arith.mulf %113, %112 : vector<8x32xf32>
    %cst_84 = arith.constant dense<0.000000e+00> : vector<8x32xf32>
    %115 = tpu.matmul %101, %90, %cst_84 {dimension_numbers = #tpu.dot_dimension_numbers<[1], [0], [0], [1], [0, 0, 1, 1], [], []>} : vector<8x8xf32>, vector<8x32xf32>, vector<8x32xf32> -> vector<8x32xf32>
    %116 = arith.addf %114, %115 : vector<8x32xf32>
    %c2_85 = arith.constant 2 : index
    %c0_86 = arith.constant 0 : index
    %c0_87 = arith.constant 0 : index
    %117 = vector.load %arg10[%c2_85, %c0_86, %c0_87] : memref<4x8x32xf32, #tpu.memory_space<vmem>>, vector<1x8x32xf32>
    %118 = vector.shape_cast %117 : vector<1x8x32xf32> to vector<8x32xf32>
    %119 = vector.shape_cast %116 : vector<8x32xf32> to vector<1x8x32xf32>
    tpu.vector_store %arg10[%c2_85, %c0_86, %c0_87], %119 {strides = array<i32>} : memref<4x8x32xf32, #tpu.memory_space<vmem>>, vector<1x8x32xf32>,
    %c2_88 = arith.constant 2 : index
    %c0_89 = arith.constant 0 : index
    %c0_90 = arith.constant 0 : index
    %120 = vector.load %arg8[%c2_88, %c0_89, %c0_90] : memref<4x8x1xf32, #tpu.memory_space<vmem>>, vector<1x8x1xf32>
    %121 = vector.shape_cast %120 : vector<1x8x1xf32> to vector<8x1xf32>
    %122 = vector.shape_cast %96 : vector<8x1xf32> to vector<1x8x1xf32>
    tpu.vector_store %arg8[%c2_88, %c0_89, %c0_90], %122 {strides = array<i32>} : memref<4x8x1xf32, #tpu.memory_space<vmem>>, vector<1x8x1xf32>,
    %c0_91 = arith.constant 0 : index
    %c0_92 = arith.constant 0 : index
    %c96 = arith.constant 96 : index
    %123 = vector.load %arg4[%c0_91, %c0_92, %c96] : memref<1x8x128xf32, #tpu.memory_space<vmem>>, vector<1x8x32xf32>
    %124 = vector.shape_cast %123 : vector<1x8x32xf32> to vector<8x32xf32>
    %cst_93 = arith.constant 0.176776692 : f32
    %125 = vector.broadcast %cst_93 : f32 to vector<8x32xf32>
    %126 = arith.mulf %124, %125 : vector<8x32xf32>
    %c0_94 = arith.constant 0 : index
    %c0_95 = arith.constant 0 : index
    %c96_96 = arith.constant 96 : index
    %127 = vector.load %arg5[%c0_94, %c0_95, %c96_96] : memref<1x8x128xf32, #tpu.memory_space<vmem>>, vector<1x8x32xf32>
    %128 = vector.shape_cast %127 : vector<1x8x32xf32> to vector<8x32xf32>
    %c0_97 = arith.constant 0 : index
    %c0_98 = arith.constant 0 : index
    %c96_99 = arith.constant 96 : index
    %129 = vector.load %arg6[%c0_97, %c0_98, %c96_99] : memref<1x8x128xf32, #tpu.memory_space<vmem>>, vector<1x8x32xf32>
    %130 = vector.shape_cast %129 : vector<1x8x32xf32> to vector<8x32xf32>
    %cst_100 = arith.constant dense<0.000000e+00> : vector<8x8xf32>
    %131 = tpu.matmul %126, %128, %cst_100 {dimension_numbers = #tpu.dot_dimension_numbers<[1], [1], [0], [0], [0, 0, 1, 0], [], []>} : vector<8x32xf32>, vector<8x32xf32>, vector<8x8xf32> -> vector<8x8xf32>
    %c3 = arith.constant 3 : index
    %c0_101 = arith.constant 0 : index
    %c0_102 = arith.constant 0 : index
    %132 = vector.load %arg8[%c3, %c0_101, %c0_102] : memref<4x8x1xf32, #tpu.memory_space<vmem>>, vector<1x8x1xf32>
    %133 = vector.shape_cast %132 : vector<1x8x1xf32> to vector<8x1xf32>
    %cst_103 = arith.constant dense<0xFF800000> : vector<8xf32>
    %134 = vector.multi_reduction <maximumf>, %131, %cst_103 [1] : vector<8x8xf32> to vector<8xf32>
    %135 = vector.shape_cast %134 : vector<8xf32> to vector<8x1xf32>
    %136 = arith.maximumf %133, %135 : vector<8x1xf32>
    %137 = arith.subf %133, %136 : vector<8x1xf32>
    %138 = math.exp %137 : vector<8x1xf32>
    %139 = vector.broadcast %136 : vector<8x1xf32> to vector<8x8xf32>
    %140 = arith.subf %131, %139 : vector<8x8xf32>
    %141 = math.exp %140 : vector<8x8xf32>
    %c3_104 = arith.constant 3 : index
    %c0_105 = arith.constant 0 : index
    %c0_106 = arith.constant 0 : index
    %142 = vector.load %arg9[%c3_104, %c0_105, %c0_106] : memref<4x8x1xf32, #tpu.memory_space<vmem>>, vector<1x8x1xf32>
    %143 = vector.shape_cast %142 : vector<1x8x1xf32> to vector<8x1xf32>
    %144 = arith.mulf %138, %143 : vector<8x1xf32>
    %cst_107 = arith.constant dense<0.000000e+00> : vector<8xf32>
    %145 = vector.multi_reduction <add>, %141, %cst_107 [1] : vector<8x8xf32> to vector<8xf32>
    %146 = vector.shape_cast %145 : vector<8xf32> to vector<8x1xf32>
    %147 = arith.addf %144, %146 : vector<8x1xf32>
    %c3_108 = arith.constant 3 : index
    %c0_109 = arith.constant 0 : index
    %c0_110 = arith.constant 0 : index
    %148 = vector.load %arg9[%c3_108, %c0_109, %c0_110] : memref<4x8x1xf32, #tpu.memory_space<vmem>>, vector<1x8x1xf32>
    %149 = vector.shape_cast %148 : vector<1x8x1xf32> to vector<8x1xf32>
    %150 = vector.shape_cast %147 : vector<8x1xf32> to vector<1x8x1xf32>
    tpu.vector_store %arg9[%c3_108, %c0_109, %c0_110], %150 {strides = array<i32>} : memref<4x8x1xf32, #tpu.memory_space<vmem>>, vector<1x8x1xf32>,
    %c3_111 = arith.constant 3 : index
    %c0_112 = arith.constant 0 : index
    %c0_113 = arith.constant 0 : index
    %151 = vector.load %arg10[%c3_111, %c0_112, %c0_113] : memref<4x8x32xf32, #tpu.memory_space<vmem>>, vector<1x8x32xf32>
    %152 = vector.shape_cast %151 : vector<1x8x32xf32> to vector<8x32xf32>
    %153 = vector.broadcast %138 : vector<8x1xf32> to vector<8x32xf32>
    %154 = arith.mulf %153, %152 : vector<8x32xf32>
    %cst_114 = arith.constant dense<0.000000e+00> : vector<8x32xf32>
    %155 = tpu.matmul %141, %130, %cst_114 {dimension_numbers = #tpu.dot_dimension_numbers<[1], [0], [0], [1], [0, 0, 1, 1], [], []>} : vector<8x8xf32>, vector<8x32xf32>, vector<8x32xf32> -> vector<8x32xf32>
    %156 = arith.addf %154, %155 : vector<8x32xf32>
    %c3_115 = arith.constant 3 : index
    %c0_116 = arith.constant 0 : index
    %c0_117 = arith.constant 0 : index
    %157 = vector.load %arg10[%c3_115, %c0_116, %c0_117] : memref<4x8x32xf32, #tpu.memory_space<vmem>>, vector<1x8x32xf32>
    %158 = vector.shape_cast %157 : vector<1x8x32xf32> to vector<8x32xf32>
    %159 = vector.shape_cast %156 : vector<8x32xf32> to vector<1x8x32xf32>
    tpu.vector_store %arg10[%c3_115, %c0_116, %c0_117], %159 {strides = array<i32>} : memref<4x8x32xf32, #tpu.memory_space<vmem>>, vector<1x8x32xf32>,
    %c3_118 = arith.constant 3 : index
    %c0_119 = arith.constant 0 : index
    %c0_120 = arith.constant 0 : index
    %160 = vector.load %arg8[%c3_118, %c0_119, %c0_120] : memref<4x8x1xf32, #tpu.memory_space<vmem>>, vector<1x8x1xf32>
    %161 = vector.shape_cast %160 : vector<1x8x1xf32> to vector<8x1xf32>
    %162 = vector.shape_cast %136 : vector<8x1xf32> to vector<1x8x1xf32>
    tpu.vector_store %arg8[%c3_118, %c0_119, %c0_120], %162 {strides = array<i32>} : memref<4x8x1xf32, #tpu.memory_space<vmem>>, vector<1x8x1xf32>,
    %c0_i32_121 = arith.constant 0 : i32
    %163 = arith.cmpi eq, %arg3, %c0_i32_121 : i32
    %164 = arith.extui %163 : i1 to i32
    %c0_i32_122 = arith.constant 0 : i32
    %165 = arith.cmpi ne, %164, %c0_i32_122 : i32
    scf.if %165 {
      %c0_123 = arith.constant 0 : index
      %c0_124 = arith.constant 0 : index
      %c0_125 = arith.constant 0 : index
      %166 = vector.load %arg10[%c0_123, %c0_124, %c0_125] : memref<4x8x32xf32, #tpu.memory_space<vmem>>, vector<1x8x32xf32>
      %167 = vector.shape_cast %166 : vector<1x8x32xf32> to vector<8x32xf32>
      %c0_126 = arith.constant 0 : index
      %c0_127 = arith.constant 0 : index
      %c0_128 = arith.constant 0 : index
      %168 = vector.load %arg9[%c0_126, %c0_127, %c0_128] : memref<4x8x1xf32, #tpu.memory_space<vmem>>, vector<1x8x1xf32>
      %169 = vector.shape_cast %168 : vector<1x8x1xf32> to vector<8x1xf32>
      %170 = tpu.reciprocal %169 {approx = true} : vector<8x1xf32> -> vector<8x1xf32>
      %171 = vector.broadcast %170 : vector<8x1xf32> to vector<8x32xf32>
      %172 = arith.mulf %167, %171 : vector<8x32xf32>
      %c0_129 = arith.constant 0 : index
      %c0_130 = arith.constant 0 : index
      %c0_131 = arith.constant 0 : index
      %173 = vector.load %arg7[%c0_129, %c0_130, %c0_131] : memref<1x8x128xf32, #tpu.memory_space<vmem>>, vector<1x8x32xf32>
      %174 = vector.shape_cast %173 : vector<1x8x32xf32> to vector<8x32xf32>
      %175 = vector.shape_cast %172 : vector<8x32xf32> to vector<1x8x32xf32>
      tpu.vector_store %arg7[%c0_129, %c0_130, %c0_131], %175 {strides = array<i32>} : memref<1x8x128xf32, #tpu.memory_space<vmem>>, vector<1x8x32xf32>,
      %c1_132 = arith.constant 1 : index
      %c0_133 = arith.constant 0 : index
      %c0_134 = arith.constant 0 : index
      %176 = vector.load %arg10[%c1_132, %c0_133, %c0_134] : memref<4x8x32xf32, #tpu.memory_space<vmem>>, vector<1x8x32xf32>
      %177 = vector.shape_cast %176 : vector<1x8x32xf32> to vector<8x32xf32>
      %c1_135 = arith.constant 1 : index
      %c0_136 = arith.constant 0 : index
      %c0_137 = arith.constant 0 : index
      %178 = vector.load %arg9[%c1_135, %c0_136, %c0_137] : memref<4x8x1xf32, #tpu.memory_space<vmem>>, vector<1x8x1xf32>
      %179 = vector.shape_cast %178 : vector<1x8x1xf32> to vector<8x1xf32>
      %180 = tpu.reciprocal %179 {approx = true} : vector<8x1xf32> -> vector<8x1xf32>
      %181 = vector.broadcast %180 : vector<8x1xf32> to vector<8x32xf32>
      %182 = arith.mulf %177, %181 : vector<8x32xf32>
      %c0_138 = arith.constant 0 : index
      %c0_139 = arith.constant 0 : index
      %c32_140 = arith.constant 32 : index
      %183 = vector.load %arg7[%c0_138, %c0_139, %c32_140] : memref<1x8x128xf32, #tpu.memory_space<vmem>>, vector<1x8x32xf32>
      %184 = vector.shape_cast %183 : vector<1x8x32xf32> to vector<8x32xf32>
      %185 = vector.shape_cast %182 : vector<8x32xf32> to vector<1x8x32xf32>
      tpu.vector_store %arg7[%c0_138, %c0_139, %c32_140], %185 {strides = array<i32>} : memref<1x8x128xf32, #tpu.memory_space<vmem>>, vector<1x8x32xf32>,
      %c2_141 = arith.constant 2 : index
      %c0_142 = arith.constant 0 : index
      %c0_143 = arith.constant 0 : index
      %186 = vector.load %arg10[%c2_141, %c0_142, %c0_143] : memref<4x8x32xf32, #tpu.memory_space<vmem>>, vector<1x8x32xf32>
      %187 = vector.shape_cast %186 : vector<1x8x32xf32> to vector<8x32xf32>
      %c2_144 = arith.constant 2 : index
      %c0_145 = arith.constant 0 : index
      %c0_146 = arith.constant 0 : index
      %188 = vector.load %arg9[%c2_144, %c0_145, %c0_146] : memref<4x8x1xf32, #tpu.memory_space<vmem>>, vector<1x8x1xf32>
      %189 = vector.shape_cast %188 : vector<1x8x1xf32> to vector<8x1xf32>
      %190 = tpu.reciprocal %189 {approx = true} : vector<8x1xf32> -> vector<8x1xf32>
      %191 = vector.broadcast %190 : vector<8x1xf32> to vector<8x32xf32>
      %192 = arith.mulf %187, %191 : vector<8x32xf32>
      %c0_147 = arith.constant 0 : index
      %c0_148 = arith.constant 0 : index
      %c64_149 = arith.constant 64 : index
      %193 = vector.load %arg7[%c0_147, %c0_148, %c64_149] : memref<1x8x128xf32, #tpu.memory_space<vmem>>, vector<1x8x32xf32>
      %194 = vector.shape_cast %193 : vector<1x8x32xf32> to vector<8x32xf32>
      %195 = vector.shape_cast %192 : vector<8x32xf32> to vector<1x8x32xf32>
      tpu.vector_store %arg7[%c0_147, %c0_148, %c64_149], %195 {strides = array<i32>} : memref<1x8x128xf32, #tpu.memory_space<vmem>>, vector<1x8x32xf32>,
      %c3_150 = arith.constant 3 : index
      %c0_151 = arith.constant 0 : index
      %c0_152 = arith.constant 0 : index
      %196 = vector.load %arg10[%c3_150, %c0_151, %c0_152] : memref<4x8x32xf32, #tpu.memory_space<vmem>>, vector<1x8x32xf32>
      %197 = vector.shape_cast %196 : vector<1x8x32xf32> to vector<8x32xf32>
      %c3_153 = arith.constant 3 : index
      %c0_154 = arith.constant 0 : index
      %c0_155 = arith.constant 0 : index
      %198 = vector.load %arg9[%c3_153, %c0_154, %c0_155] : memref<4x8x1xf32, #tpu.memory_space<vmem>>, vector<1x8x1xf32>
      %199 = vector.shape_cast %198 : vector<1x8x1xf32> to vector<8x1xf32>
      %200 = tpu.reciprocal %199 {approx = true} : vector<8x1xf32> -> vector<8x1xf32>
      %201 = vector.broadcast %200 : vector<8x1xf32> to vector<8x32xf32>
      %202 = arith.mulf %197, %201 : vector<8x32xf32>
      %c0_156 = arith.constant 0 : index
      %c0_157 = arith.constant 0 : index
      %c96_158 = arith.constant 96 : index
      %203 = vector.load %arg7[%c0_156, %c0_157, %c96_158] : memref<1x8x128xf32, #tpu.memory_space<vmem>>, vector<1x8x32xf32>
      %204 = vector.shape_cast %203 : vector<1x8x32xf32> to vector<8x32xf32>
      %205 = vector.shape_cast %202 : vector<8x32xf32> to vector<1x8x32xf32>
      tpu.vector_store %arg7[%c0_156, %c0_157, %c96_158], %205 {strides = array<i32>} : memref<1x8x128xf32, #tpu.memory_space<vmem>>, vector<1x8x32xf32>,
    } else {
    }
    return
  }
  func.func @transform_0(%arg0: i32, %arg1: i32, %arg2: i32, %arg3: i32) -> (i32, i32, i32) {
    %c0_i32 = arith.constant 0 : i32
    return %arg0, %arg2, %arg1 : i32, i32, i32
  }
  func.func @transform_1(%arg0: i32, %arg1: i32, %arg2: i32, %arg3: i32) -> (i32, i32, i32) {
    %c0_i32 = arith.constant 0 : i32
    %0 = arith.addi %c0_i32, %arg1 : i32
    %c0_i32_0 = arith.constant 0 : i32
    return %arg0, %arg3, %0 : i32, i32, i32
  }
  func.func @transform_2(%arg0: i32, %arg1: i32, %arg2: i32, %arg3: i32) -> (i32, i32, i32) {
    %c1_i32 = arith.constant 1 : i32
    %0 = arith.addi %c1_i32, %arg1 : i32
    %c0_i32 = arith.constant 0 : i32
    return %arg0, %arg3, %0 : i32, i32, i32
  }
  func.func @transform_3(%arg0: i32, %arg1: i32, %arg2: i32, %arg3: i32) -> (i32, i32, i32) {
    %c0_i32 = arith.constant 0 : i32
    return %arg0, %arg2, %arg1 : i32, i32, i32
  }
}

module attributes {stable_mosaic.version = 11 : i64} {
  func.func @kernel(%arg0: i32, %arg1: i32, %arg2: i32, %arg3: memref<16x32xf32, #tpu.memory_space<vmem>>, %arg4: memref<32x256xf32, #tpu.memory_space<vmem>>, %arg5: memref<16x256xf32, #tpu.memory_space<vmem>>, %arg6: memref<16x256xf32, #tpu.memory_space<vmem>>) attributes {dimension_semantics = [#tpu.dimension_semantics<parallel>, #tpu.dimension_semantics<parallel>, #tpu.dimension_semantics<arbitrary>], iteration_bounds = array<i64: 1, 1, 1>, scalar_prefetch = 0 : i64, scratch_operands = 1 : i64, tpu.core_type = #tpu.core_type<tc>, window_params = [{transform_indices = @transform_0, window_bounds = array<i64: 16, 32>}, {transform_indices = @transform_1, window_bounds = array<i64: 32, 256>}, {transform_indices = @transform_2, window_bounds = array<i64: 16, 256>}]} {
    %c0_i32 = arith.constant 0 : i32
    %0 = arith.cmpi eq, %arg2, %c0_i32 : i32
    %1 = arith.extui %0 : i1 to i32
    %c0_i32_0 = arith.constant 0 : i32
    %2 = arith.cmpi ne, %1, %c0_i32_0 : i32
    scf.if %2 {
      %cst_10 = arith.constant 0.000000e+00 : f32
      %12 = vector.broadcast %cst_10 : f32 to vector<16x256xf32>
      %c0_11 = arith.constant 0 : index
      %c0_12 = arith.constant 0 : index
      %13 = vector.load %arg6[%c0_11, %c0_12] : memref<16x256xf32, #tpu.memory_space<vmem>>, vector<16x256xf32>
      tpu.vector_store %arg6[%c0_11, %c0_12], %12 {strides = array<i32>} : memref<16x256xf32, #tpu.memory_space<vmem>>, vector<16x256xf32>,
    } else {
    }
    %c0 = arith.constant 0 : index
    %c0_1 = arith.constant 0 : index
    %3 = vector.load %arg6[%c0, %c0_1] : memref<16x256xf32, #tpu.memory_space<vmem>>, vector<16x256xf32>
    %c0_2 = arith.constant 0 : index
    %c0_3 = arith.constant 0 : index
    %4 = vector.load %arg3[%c0_2, %c0_3] : memref<16x32xf32, #tpu.memory_space<vmem>>, vector<16x32xf32>
    %c0_4 = arith.constant 0 : index
    %c0_5 = arith.constant 0 : index
    %5 = vector.load %arg4[%c0_4, %c0_5] : memref<32x256xf32, #tpu.memory_space<vmem>>, vector<32x256xf32>
    %cst = arith.constant dense<0.000000e+00> : vector<16x256xf32>
    %6 = tpu.matmul %4, %5, %cst {dimension_numbers = #tpu.dot_dimension_numbers<[1], [0], [0], [1], [0, 0, 1, 1], [], []>} : vector<16x32xf32>, vector<32x256xf32>, vector<16x256xf32> -> vector<16x256xf32>
    %7 = arith.addf %3, %6 : vector<16x256xf32>
    %c0_6 = arith.constant 0 : index
    %c0_7 = arith.constant 0 : index
    %8 = vector.load %arg6[%c0_6, %c0_7] : memref<16x256xf32, #tpu.memory_space<vmem>>, vector<16x256xf32>
    tpu.vector_store %arg6[%c0_6, %c0_7], %7 {strides = array<i32>} : memref<16x256xf32, #tpu.memory_space<vmem>>, vector<16x256xf32>,
    %c0_i32_8 = arith.constant 0 : i32
    %9 = arith.cmpi eq, %arg2, %c0_i32_8 : i32
    %10 = arith.extui %9 : i1 to i32
    %c0_i32_9 = arith.constant 0 : i32
    %11 = arith.cmpi ne, %10, %c0_i32_9 : i32
    scf.if %11 {
      %c0_10 = arith.constant 0 : index
      %c0_11 = arith.constant 0 : index
      %12 = vector.load %arg6[%c0_10, %c0_11] : memref<16x256xf32, #tpu.memory_space<vmem>>, vector<16x256xf32>
      %c0_12 = arith.constant 0 : index
      %c0_13 = arith.constant 0 : index
      %13 = vector.load %arg5[%c0_12, %c0_13] : memref<16x256xf32, #tpu.memory_space<vmem>>, vector<16x256xf32>
      tpu.vector_store %arg5[%c0_12, %c0_13], %12 {strides = array<i32>} : memref<16x256xf32, #tpu.memory_space<vmem>>, vector<16x256xf32>,
    } else {
    }
    return
  }
  func.func @transform_0(%arg0: i32, %arg1: i32, %arg2: i32) -> (i32, i32) {
    %c0_i32 = arith.constant 0 : i32
    return %arg0, %arg2 : i32, i32
  }
  func.func @transform_1(%arg0: i32, %arg1: i32, %arg2: i32) -> (i32, i32) {
    %c0_i32 = arith.constant 0 : i32
    return %arg2, %arg1 : i32, i32
  }
  func.func @transform_2(%arg0: i32, %arg1: i32, %arg2: i32) -> (i32, i32) {
    %c0_i32 = arith.constant 0 : i32
    return %arg0, %arg1 : i32, i32
  }
}

module attributes {stable_mosaic.version = 11 : i64} {
  func.func @kernel(%arg0: i32, %arg1: i32, %arg2: i32, %arg3: memref<16x128xf32, #tpu.memory_space<vmem>>, %arg4: memref<128x32xf32, #tpu.memory_space<vmem>>, %arg5: memref<1x32xf32, #tpu.memory_space<vmem>>, %arg6: memref<16x32xf32, #tpu.memory_space<vmem>>, %arg7: memref<16x32xf32, #tpu.memory_space<vmem>>) attributes {dimension_semantics = [#tpu.dimension_semantics<parallel>, #tpu.dimension_semantics<parallel>, #tpu.dimension_semantics<arbitrary>], iteration_bounds = array<i64: 1, 1, 1>, scalar_prefetch = 0 : i64, scratch_operands = 1 : i64, tpu.core_type = #tpu.core_type<tc>, window_params = [{transform_indices = @transform_0, window_bounds = array<i64: 16, 128>}, {transform_indices = @transform_1, window_bounds = array<i64: 128, 32>}, {transform_indices = @transform_2, window_bounds = array<i64: 1, 32>}, {transform_indices = @transform_3, window_bounds = array<i64: 16, 32>}]} {
    %c0_i32 = arith.constant 0 : i32
    %0 = arith.cmpi eq, %arg2, %c0_i32 : i32
    %1 = arith.extui %0 : i1 to i32
    %c0_i32_0 = arith.constant 0 : i32
    %2 = arith.cmpi ne, %1, %c0_i32_0 : i32
    scf.if %2 {
      %cst_10 = arith.constant 0.000000e+00 : f32
      %12 = vector.broadcast %cst_10 : f32 to vector<16x32xf32>
      %c0_11 = arith.constant 0 : index
      %c0_12 = arith.constant 0 : index
      %13 = vector.load %arg7[%c0_11, %c0_12] : memref<16x32xf32, #tpu.memory_space<vmem>>, vector<16x32xf32>
      tpu.vector_store %arg7[%c0_11, %c0_12], %12 {strides = array<i32>} : memref<16x32xf32, #tpu.memory_space<vmem>>, vector<16x32xf32>,
    } else {
    }
    %c0 = arith.constant 0 : index
    %c0_1 = arith.constant 0 : index
    %3 = vector.load %arg7[%c0, %c0_1] : memref<16x32xf32, #tpu.memory_space<vmem>>, vector<16x32xf32>
    %c0_2 = arith.constant 0 : index
    %c0_3 = arith.constant 0 : index
    %4 = vector.load %arg3[%c0_2, %c0_3] : memref<16x128xf32, #tpu.memory_space<vmem>>, vector<16x128xf32>
    %c0_4 = arith.constant 0 : index
    %c0_5 = arith.constant 0 : index
    %5 = vector.load %arg4[%c0_4, %c0_5] : memref<128x32xf32, #tpu.memory_space<vmem>>, vector<128x32xf32>
    %cst = arith.constant dense<0.000000e+00> : vector<16x32xf32>
    %6 = tpu.matmul %4, %5, %cst {dimension_numbers = #tpu.dot_dimension_numbers<[1], [0], [0], [1], [0, 0, 1, 1], [], []>} : vector<16x128xf32>, vector<128x32xf32>, vector<16x32xf32> -> vector<16x32xf32>
    %7 = arith.addf %3, %6 : vector<16x32xf32>
    %c0_6 = arith.constant 0 : index
    %c0_7 = arith.constant 0 : index
    %8 = vector.load %arg7[%c0_6, %c0_7] : memref<16x32xf32, #tpu.memory_space<vmem>>, vector<16x32xf32>
    tpu.vector_store %arg7[%c0_6, %c0_7], %7 {strides = array<i32>} : memref<16x32xf32, #tpu.memory_space<vmem>>, vector<16x32xf32>,
    %c0_i32_8 = arith.constant 0 : i32
    %9 = arith.cmpi eq, %arg2, %c0_i32_8 : i32
    %10 = arith.extui %9 : i1 to i32
    %c0_i32_9 = arith.constant 0 : i32
    %11 = arith.cmpi ne, %10, %c0_i32_9 : i32
    scf.if %11 {
      %c0_10 = arith.constant 0 : index
      %c0_11 = arith.constant 0 : index
      %12 = vector.load %arg7[%c0_10, %c0_11] : memref<16x32xf32, #tpu.memory_space<vmem>>, vector<16x32xf32>
      %c0_12 = arith.constant 0 : index
      %c0_13 = arith.constant 0 : index
      %13 = vector.load %arg5[%c0_12, %c0_13] : memref<1x32xf32, #tpu.memory_space<vmem>>, vector<1x32xf32>
      %14 = vector.broadcast %13 : vector<1x32xf32> to vector<16x32xf32>
      %15 = arith.addf %12, %14 : vector<16x32xf32>
      %c0_14 = arith.constant 0 : index
      %c0_15 = arith.constant 0 : index
      %16 = vector.load %arg6[%c0_14, %c0_15] : memref<16x32xf32, #tpu.memory_space<vmem>>, vector<16x32xf32>
      tpu.vector_store %arg6[%c0_14, %c0_15], %15 {strides = array<i32>} : memref<16x32xf32, #tpu.memory_space<vmem>>, vector<16x32xf32>,
    } else {
    }
    return
  }
  func.func @transform_0(%arg0: i32, %arg1: i32, %arg2: i32) -> (i32, i32) {
    %c0_i32 = arith.constant 0 : i32
    return %arg0, %arg2 : i32, i32
  }
  func.func @transform_1(%arg0: i32, %arg1: i32, %arg2: i32) -> (i32, i32) {
    %c0_i32 = arith.constant 0 : i32
    return %arg2, %arg1 : i32, i32
  }
  func.func @transform_2(%arg0: i32, %arg1: i32, %arg2: i32) -> (i32, i32) {
    %c0_i32 = arith.constant 0 : i32
    %c0_i32_0 = arith.constant 0 : i32
    return %c0_i32, %arg1 : i32, i32
  }
  func.func @transform_3(%arg0: i32, %arg1: i32, %arg2: i32) -> (i32, i32) {
    %c0_i32 = arith.constant 0 : i32
    return %arg0, %arg1 : i32, i32
  }
}

</mosaic_0001>

<llo_original>
// kernel: attention_forward.4
$region0: #{attention_forward.4}
  #allocation0 [shape = 'u32[]', space=smem, size = 0x4, offset = 0x4, fixed_abs, tag = 'smem constant byte address 0x4 - core index']
  #allocation1 [shape = 'u32[144,128]{1,0:T(1,128)}', space=vmem, size = 0x12000, scoped, tag = 'internal scratch']
  #allocation2 [shape = 'f32[16,128]{1,0:T(8,128)}', space=vmem, size = 0x2000, scoped, tag = 'scratch operand']
  %s0 = inlined_call_operand.hbm [shape: f32[16,32], index: 0, kind: input, shape index: {}]
  %s1 = inlined_call_operand.hbm [shape: f32[32,128], index: 1, kind: input, shape index: {}]
  %s2 = inlined_call_operand.vmem [shape: f32[16,128], index: 2, kind: output, shape index: {}]
  %s3 = sld [smem:[#allocation0]]
  $region34: #{attention_forward.4} parent=0
    _
  %s5 = ssub.s32 1, %s3
  %s6 = scalar_select 0, %s5, %s3
  $region1: #{attention_forward.4} parent=0
    #allocation3 [shape = 'u8[8192]{0}', space=vmem, size = 0x2000, scoped, tag = 'input window, operand 0, single buffered']
    #allocation4 [shape = 's32[1]{0}', space=sflag, size = 0x4, scoped, tag = 'scoped memory for attention_forward.4']
    #allocation5 [shape = 'u8[16384]{0}', space=vmem, size = 0x4000, scoped, tag = 'input window, operand 1, single buffered']
    #allocation6 [shape = 's32[1]{0}', space=sflag, size = 0x4, scoped, tag = 'scoped memory for attention_forward.4']
    %7 = vsyncpa [#allocation4], 0
    %8 = vsyncpa [#allocation6], 0
    // Predicated region
    $region2: #{attention_forward.4} parent=1 // pred_check
      _
    $region3: #{attention_forward.4} parent=1 // pred_check_branch
      %10 = sbr.rel (0) target = $region5
    $region4: #{attention_forward.4} parent=1 // pred_region
      %s12 = ssub.s32 256, 256
      %13 = vsyncadd [#allocation4], %s12
      %s14 = sshll.u32 [#allocation3], 4
      %s15 = int_to_ptr.vmem [resolvable:$true] %s14
      %20 = dma.hbm_to_vmem [thread:$0]  %s0, 256, %s15, [#allocation4], 128, 128, 8
    $region5: #{attention_forward.4} parent=1 // pred_fallthru
      _
    // Predicated region
    $region6: #{attention_forward.4} parent=1 // pred_check
      _
    $region7: #{attention_forward.4} parent=1 // pred_check_branch
      %22 = sbr.rel (0) target = $region9
    $region8: #{attention_forward.4} parent=1 // pred_region
      %s24 = ssub.s32 512, 512
      %25 = vsyncadd [#allocation6], %s24
      %s26 = sshll.u32 [#allocation5], 4
      %s27 = int_to_ptr.vmem [resolvable:$true] %s26
      %32 = dma.hbm_to_vmem [thread:$0]  %s1, 512, %s27, [#allocation6], 128, 128, 8
    $region9: #{attention_forward.4} parent=1 // pred_fallthru
      _
    // Predicated region
    $region10: #{attention_forward.4} parent=1 // pred_check
      _
    $region11: #{attention_forward.4} parent=1 // pred_check_branch
      %34 = sbr.rel (0) target = $region13
    $region12: #{attention_forward.4} parent=1 // pred_region
      %35 = dma.done [#allocation4], 256
    $region13: #{attention_forward.4} parent=1 // pred_fallthru
      _
    // Predicated region
    $region14: #{attention_forward.4} parent=1 // pred_check
      _
    $region15: #{attention_forward.4} parent=1 // pred_check_branch
      %37 = sbr.rel (0) target = $region17
    $region16: #{attention_forward.4} parent=1 // pred_region
      %38 = dma.done [#allocation6], 512
    $region17: #{attention_forward.4} parent=1 // pred_fallthru
      _
    %p39 = scmp.eq.s32.totalorder 0, 0
    // Predicated region
    $region18: #{attention_forward.4} parent=1 // pred_check
      %p40 = pneg %p39
    $region19: #{attention_forward.4} parent=1 // pred_check_branch
      %42 = sbr.rel (%p40) target = $region21
    $region20: #{attention_forward.4} parent=1 // pred_region
      %43 = vst [vmem:[#allocation2] sm:$0xff] 0.0
      %44 = vst [vmem:[#allocation2 + $0x8] sm:$0xff] 0.0
    $region21: #{attention_forward.4} parent=1 // pred_fallthru
      _
    %v45 = vld [vmem:[#allocation2] sm:$0xff]
    %v46 = vld [vmem:[#allocation2 + $0x8] sm:$0xff]
    %v47 = vld [vmem:[#allocation3] sm:$0xff]
    %v48 = vld [vmem:[#allocation3 + $0x8] sm:$0xff]
    %v49 = vld [vmem:[#allocation5] sm:$0xff]
    %v50 = vld [vmem:[#allocation5 + $0x8] sm:$0xff]
    %v51 = vld [vmem:[#allocation5 + $0x10] sm:$0xff]
    %v52 = vld [vmem:[#allocation5 + $0x18] sm:$0xff]
    %vm53 = vcmask 261120
    %v55 = vsel %vm53, %v47, 0
    %v58 = vsel %vm53, %v48, 0
    %60 = vmatprep.subr.mxu0 0.0
    %61 = vmatpush1.msra.mxu0 %v49
    %62 = vmatprep.subr.mxu0 0.0
    %63 = vmatpush1.msra.mxu0 %v50
    %64 = vmatprep.subr.mxu0 0.0
    %65 = vmatpush1.msra.mxu0 %v51
    %66 = vmatprep.subr.mxu0 0.0
    %67 = vmatpush1.msra.mxu0 %v52
    %68 = vmatprep.subr.mxu0 0.0
    %69 = vmatpush1.msra.mxu0 0.0
    %70 = vmatprep.subr.mxu0 0.0
    %71 = vmatpush1.msra.mxu0 0.0
    %72 = vmatprep.subr.mxu0 0.0
    %73 = vmatpush1.msra.mxu0 0.0
    %74 = vmatprep.subr.mxu0 0.0
    %75 = vmatpush1.msra.mxu0 0.0
    %76 = vmatprep.subr.mxu0 0.0
    %77 = vmatpush1.msra.mxu0 0.0
    %78 = vmatprep.subr.mxu0 0.0
    %79 = vmatpush1.msra.mxu0 0.0
    %80 = vmatprep.subr.mxu0 0.0
    %81 = vmatpush1.msra.mxu0 0.0
    %82 = vmatprep.subr.mxu0 0.0
    %83 = vmatpush1.msra.mxu0 0.0
    %84 = vmatprep.subr.mxu0 0.0
    %85 = vmatpush1.msra.mxu0 0.0
    %86 = vmatprep.subr.mxu0 0.0
    %87 = vmatpush1.msra.mxu0 0.0
    %88 = vmatprep.subr.mxu0 0.0
    %89 = vmatpush1.msra.mxu0 0.0
    %90 = vmatprep.subr.mxu0 0.0
    %91 = vmatpush1.msra.mxu0 0.0
    %92 = vmatprep.subr.mxu0 0.0
    %93 = vmatpush1.msra.mxu0 0.0
    %94 = vmatprep.subr.mxu0 0.0
    %95 = vmatpush1.msra.mxu0 0.0
    %96 = vmatprep.subr.mxu0 0.0
    %97 = vmatpush1.msra.mxu0 0.0
    %98 = vmatprep.subr.mxu0 0.0
    %99 = vmatpush1.msra.mxu0 0.0
    %100 = vmatprep.subr.mxu0 0.0
    %101 = vmatpush1.msra.mxu0 0.0
    %102 = vmatprep.subr.mxu0 0.0
    %103 = vmatpush1.msra.mxu0 0.0
    %104 = vmatprep.subr.mxu0 0.0
    %105 = vmatpush1.msra.mxu0 0.0
    %106 = vmatprep.subr.mxu0 0.0
    %107 = vmatpush1.msra.mxu0 0.0
    %108 = vmatprep.subr.mxu0 0.0
    %109 = vmatpush1.msra.mxu0 0.0
    %110 = vmatprep.subr.mxu0 0.0
    %111 = vmatpush1.msra.mxu0 0.0
    %112 = vmatprep.subr.mxu0 0.0
    %113 = vmatpush1.msra.mxu0 0.0
    %114 = vmatprep.subr.mxu0 0.0
    %115 = vmatpush1.msra.mxu0 0.0
    %116 = vmatprep.subr.mxu0 0.0
    %117 = vmatpush1.msra.mxu0 0.0
    %118 = vmatprep.subr.mxu0 0.0
    %119 = vmatpush1.msra.mxu0 0.0
    %120 = vmatprep.subr.mxu0 0.0
    %121 = vmatpush1.msra.mxu0 0.0
    %122 = vmatprep.subr.mxu0 0.0
    %123 = vmatpush1.msra.mxu0 0.0
    %124 = vmatprep.mubr.f32.mxu0 0.0
    %125 = vmatmul.mubr.f32.gmra.mrb[0].mxu0 %v55
    %v126 = vpop.f32.mrb[0].mxu0
    %v127 = vadd.f32 0.0, %v126
    %v128 = vpop.f32.mrb[0].mxu0
    %129 = vmatprep.mubr.f32.mxu0 0.0
    %130 = vmatmul.mubr.f32.gmra.mrb[0].mxu0 %v58
    %v131 = vpop.f32.mrb[0].mxu0
    %v132 = vadd.f32 0.0, %v131
    %v133 = vpop.f32.mrb[0].mxu0
    %134 = vdwg.mxu0
    %v135 = vadd.f32 %v45, %v127
    %v136 = vadd.f32 %v46, %v132
    %137 = vst [vmem:[#allocation2] sm:$0xff] %v135
    %138 = vst [vmem:[#allocation2 + $0x8] sm:$0xff] %v136
    // Predicated region
    $region22: #{attention_forward.4} parent=1 // pred_check
      %p139 = pneg %p39
    $region23: #{attention_forward.4} parent=1 // pred_check_branch
      %141 = sbr.rel (%p139) target = $region25
    $region24: #{attention_forward.4} parent=1 // pred_region
      %v142 = vld [vmem:[#allocation2] sm:$0xff]
      %v143 = vld [vmem:[#allocation2 + $0x8] sm:$0xff]
      %144 = vst [vmem:[%s2] sm:$0xff] %v142
      %145 = vst [vmem:[%s2 + $0x8] sm:$0xff] %v143
    $region25: #{attention_forward.4} parent=1 // pred_fallthru
      _
    // Predicated region
    $region26: #{attention_forward.4} parent=1 // pred_check
      _
    $region27: #{attention_forward.4} parent=1 // pred_check_branch
      %147 = sbr.rel (0) target = $region29
    $region28: #{attention_forward.4} parent=1 // pred_region
      _
    $region29: #{attention_forward.4} parent=1 // pred_fallthru
      _
    // Predicated region
    $region30: #{attention_forward.4} parent=1 // pred_check
      _
    $region31: #{attention_forward.4} parent=1 // pred_check_branch
      %149 = sbr.rel (0) target = $region33
    $region32: #{attention_forward.4} parent=1 // pred_region
      _
    $region33: #{attention_forward.4} parent=1 // pred_fallthru
      _
    %150 = vsyncpa [#allocation4], 1
    %151 = vsyncpa [#allocation6], 1

// kernel: attention_forward.5
$region0: #{attention_forward.5}
  #allocation0 [shape = 'u32[]', space=smem, size = 0x4, offset = 0x4, fixed_abs, tag = 'smem constant byte address 0x4 - core index']
  #allocation1 [shape = 'u32[144,128]{1,0:T(1,128)}', space=vmem, size = 0x12000, scoped, tag = 'internal scratch']
  #allocation2 [shape = 'f32[16,256]{1,0:T(8,128)}', space=vmem, size = 0x4000, scoped, tag = 'scratch operand']
  %s0 = inlined_call_operand.vmem [shape: f32[16,32], index: 0, kind: input, shape index: {}]
  %s1 = inlined_call_operand.vmem [shape: f32[32,256], index: 1, kind: input, shape index: {}]
  %s2 = inlined_call_operand.vmem [shape: f32[16,256], index: 2, kind: output, shape index: {}]
  %s3 = sld [smem:[#allocation0]]
  $region26: #{attention_forward.5} parent=0
    _
  %s5 = ssub.s32 1, %s3
  %s6 = scalar_select 0, %s5, %s3
  // Predicated region
  $region2: #{attention_forward.5} parent=0 // pred_check
    _
  $region3: #{attention_forward.5} parent=0 // pred_check_branch
    %8 = sbr.rel (0) target = $region5
  $region4: #{attention_forward.5} parent=0 // pred_region
    _
  $region5: #{attention_forward.5} parent=0 // pred_fallthru
    _
  // Predicated region
  $region6: #{attention_forward.5} parent=0 // pred_check
    _
  $region7: #{attention_forward.5} parent=0 // pred_check_branch
    %10 = sbr.rel (0) target = $region9
  $region8: #{attention_forward.5} parent=0 // pred_region
    _
  $region9: #{attention_forward.5} parent=0 // pred_fallthru
    _
  %p11 = scmp.eq.s32.totalorder 0, 0
  // Predicated region
  $region10: #{attention_forward.5} parent=0 // pred_check
    %p12 = pneg %p11
  $region11: #{attention_forward.5} parent=0 // pred_check_branch
    %14 = sbr.rel (%p12) target = $region13
  $region12: #{attention_forward.5} parent=0 // pred_region
    %15 = vst [vmem:[#allocation2] sm:$0xff] 0.0
    %16 = vst [vmem:[#allocation2 + $0x8] sm:$0xff] 0.0
    %17 = vst [vmem:[#allocation2 + $0x10] sm:$0xff] 0.0
    %18 = vst [vmem:[#allocation2 + $0x18] sm:$0xff] 0.0
  $region13: #{attention_forward.5} parent=0 // pred_fallthru
    _
  %v19 = vld [vmem:[#allocation2] sm:$0xff]
  %v20 = vld [vmem:[#allocation2 + $0x8] sm:$0xff]
  %v21 = vld [vmem:[#allocation2 + $0x10] sm:$0xff]
  %v22 = vld [vmem:[#allocation2 + $0x18] sm:$0xff]
  %v23 = vld [vmem:[%s0] sm:$0xff]
  %v24 = vld [vmem:[%s0 + $0x8] sm:$0xff]
  %v25 = vld [vmem:[%s1] sm:$0xff]
  %v26 = vld [vmem:[%s1 + $0x8] sm:$0xff]
  %v27 = vld [vmem:[%s1 + $0x10] sm:$0xff]
  %v28 = vld [vmem:[%s1 + $0x18] sm:$0xff]
  %v29 = vld [vmem:[%s1 + $0x20] sm:$0xff]
  %v30 = vld [vmem:[%s1 + $0x28] sm:$0xff]
  %v31 = vld [vmem:[%s1 + $0x30] sm:$0xff]
  %v32 = vld [vmem:[%s1 + $0x38] sm:$0xff]
  %vm33 = vcmask 261120
  %v35 = vsel %vm33, %v23, 0
  %v38 = vsel %vm33, %v24, 0
  %40 = vmatprep.subr.mxu0 %v26
  %41 = vmatpush1.msra.mxu0 %v25
  %42 = vmatprep.subr.mxu0 %v28
  %43 = vmatpush1.msra.mxu0 %v27
  %44 = vmatprep.subr.mxu0 %v30
  %45 = vmatpush1.msra.mxu0 %v29
  %46 = vmatprep.subr.mxu0 %v32
  %47 = vmatpush1.msra.mxu0 %v31
  %48 = vmatprep.subr.mxu0 0.0
  %49 = vmatpush1.msra.mxu0 0.0
  %50 = vmatprep.subr.mxu0 0.0
  %51 = vmatpush1.msra.mxu0 0.0
  %52 = vmatprep.subr.mxu0 0.0
  %53 = vmatpush1.msra.mxu0 0.0
  %54 = vmatprep.subr.mxu0 0.0
  %55 = vmatpush1.msra.mxu0 0.0
  %56 = vmatprep.subr.mxu0 0.0
  %57 = vmatpush1.msra.mxu0 0.0
  %58 = vmatprep.subr.mxu0 0.0
  %59 = vmatpush1.msra.mxu0 0.0
  %60 = vmatprep.subr.mxu0 0.0
  %61 = vmatpush1.msra.mxu0 0.0
  %62 = vmatprep.subr.mxu0 0.0
  %63 = vmatpush1.msra.mxu0 0.0
  %64 = vmatprep.subr.mxu0 0.0
  %65 = vmatpush1.msra.mxu0 0.0
  %66 = vmatprep.subr.mxu0 0.0
  %67 = vmatpush1.msra.mxu0 0.0
  %68 = vmatprep.subr.mxu0 0.0
  %69 = vmatpush1.msra.mxu0 0.0
  %70 = vmatprep.subr.mxu0 0.0
  %71 = vmatpush1.msra.mxu0 0.0
  %72 = vmatprep.subr.mxu0 0.0
  %73 = vmatpush1.msra.mxu0 0.0
  %74 = vmatprep.subr.mxu0 0.0
  %75 = vmatpush1.msra.mxu0 0.0
  %76 = vmatprep.subr.mxu0 0.0
  %77 = vmatpush1.msra.mxu0 0.0
  %78 = vmatprep.subr.mxu0 0.0
  %79 = vmatpush1.msra.mxu0 0.0
  %80 = vmatprep.subr.mxu0 0.0
  %81 = vmatpush1.msra.mxu0 0.0
  %82 = vmatprep.subr.mxu0 0.0
  %83 = vmatpush1.msra.mxu0 0.0
  %84 = vmatprep.subr.mxu0 0.0
  %85 = vmatpush1.msra.mxu0 0.0
  %86 = vmatprep.subr.mxu0 0.0
  %87 = vmatpush1.msra.mxu0 0.0
  %88 = vmatprep.subr.mxu0 0.0
  %89 = vmatpush1.msra.mxu0 0.0
  %90 = vmatprep.subr.mxu0 0.0
  %91 = vmatpush1.msra.mxu0 0.0
  %92 = vmatprep.subr.mxu0 0.0
  %93 = vmatpush1.msra.mxu0 0.0
  %94 = vmatprep.subr.mxu0 0.0
  %95 = vmatpush1.msra.mxu0 0.0
  %96 = vmatprep.subr.mxu0 0.0
  %97 = vmatpush1.msra.mxu0 0.0
  %98 = vmatprep.subr.mxu0 0.0
  %99 = vmatpush1.msra.mxu0 0.0
  %100 = vmatprep.subr.mxu0 0.0
  %101 = vmatpush1.msra.mxu0 0.0
  %102 = vmatprep.subr.mxu0 0.0
  %103 = vmatpush1.msra.mxu0 0.0
  %104 = vmatprep.mubr.f32.mxu0 0.0
  %105 = vmatmul.mubr.f32.gmra.mrb[0].mxu0 %v35
  %v106 = vpop.f32.mrb[0].mxu0
  %v107 = vadd.f32 0.0, %v106
  %v108 = vpop.f32.mrb[0].mxu0
  %v109 = vadd.f32 0.0, %v108
  %110 = vmatprep.mubr.f32.mxu0 0.0
  %111 = vmatmul.mubr.f32.gmra.mrb[0].mxu0 %v38
  %v112 = vpop.f32.mrb[0].mxu0
  %v113 = vadd.f32 0.0, %v112
  %v114 = vpop.f32.mrb[0].mxu0
  %v115 = vadd.f32 0.0, %v114
  %116 = vdwg.mxu0
  %v117 = vadd.f32 %v19, %v107
  %v118 = vadd.f32 %v20, %v109
  %v119 = vadd.f32 %v21, %v113
  %v120 = vadd.f32 %v22, %v115
  %121 = vst [vmem:[#allocation2] sm:$0xff] %v117
  %122 = vst [vmem:[#allocation2 + $0x8] sm:$0xff] %v118
  %123 = vst [vmem:[#allocation2 + $0x10] sm:$0xff] %v119
  %124 = vst [vmem:[#allocation2 + $0x18] sm:$0xff] %v120
  // Predicated region
  $region14: #{attention_forward.5} parent=0 // pred_check
    %p125 = pneg %p11
  $region15: #{attention_forward.5} parent=0 // pred_check_branch
    %127 = sbr.rel (%p125) target = $region17
  $region16: #{attention_forward.5} parent=0 // pred_region
    %v128 = vld [vmem:[#allocation2] sm:$0xff]
    %v129 = vld [vmem:[#allocation2 + $0x8] sm:$0xff]
    %v130 = vld [vmem:[#allocation2 + $0x10] sm:$0xff]
    %v131 = vld [vmem:[#allocation2 + $0x18] sm:$0xff]
    %132 = vst [vmem:[%s2] sm:$0xff] %v128
    %133 = vst [vmem:[%s2 + $0x8] sm:$0xff] %v129
    %134 = vst [vmem:[%s2 + $0x10] sm:$0xff] %v130
    %135 = vst [vmem:[%s2 + $0x18] sm:$0xff] %v131
  $region17: #{attention_forward.5} parent=0 // pred_fallthru
    _
  // Predicated region
  $region18: #{attention_forward.5} parent=0 // pred_check
    _
  $region19: #{attention_forward.5} parent=0 // pred_check_branch
    %137 = sbr.rel (0) target = $region21
  $region20: #{attention_forward.5} parent=0 // pred_region
    _
  $region21: #{attention_forward.5} parent=0 // pred_fallthru
    _
  // Predicated region
  $region22: #{attention_forward.5} parent=0 // pred_check
    _
  $region23: #{attention_forward.5} parent=0 // pred_check_branch
    %139 = sbr.rel (0) target = $region25
  $region24: #{attention_forward.5} parent=0 // pred_region
    _
  $region25: #{attention_forward.5} parent=0 // pred_fallthru
    _

// kernel: attention_forward.7
$region0: #{attention_forward.7}
  #allocation0 [shape = 'u32[]', space=smem, size = 0x4, offset = 0x4, fixed_abs, tag = 'smem constant byte address 0x4 - core index']
  #allocation1 [shape = 'u32[144,128]{1,0:T(1,128)}', space=vmem, size = 0x12000, scoped, tag = 'internal scratch']
  #allocation2 [shape = 'f32[16,32]{1,0:T(8,128)}', space=vmem, size = 0x2000, scoped, tag = 'scratch operand']
  %s0 = inlined_call_operand.vmem [shape: f32[16,128], index: 0, kind: input, shape index: {}]
  %s1 = inlined_call_operand.vmem [shape: f32[128,32], index: 1, kind: input, shape index: {}]
  %s2 = inlined_call_operand.vmem [shape: f32[1,32], index: 2, kind: input, shape index: {}]
  %s3 = inlined_call_operand.hbm [shape: f32[16,32], index: 3, kind: output, shape index: {}]
  %s4 = sld [smem:[#allocation0]]
  $region30: #{attention_forward.7} parent=0
    _
  %s6 = ssub.s32 1, %s4
  %s7 = scalar_select 0, %s6, %s4
  $region1: #{attention_forward.7} parent=0
    #allocation3 [shape = 'u8[8192]{0}', space=vmem, size = 0x2000, scoped, tag = 'output window, operand 0, single buffered']
    #allocation4 [shape = 's32[1]{0}', space=sflag, size = 0x4, scoped, tag = 'scoped memory for attention_forward.7']
    %8 = vsyncpa [#allocation4], 0
    // Predicated region
    $region2: #{attention_forward.7} parent=1 // pred_check
      _
    $region3: #{attention_forward.7} parent=1 // pred_check_branch
      %10 = sbr.rel (0) target = $region5
    $region4: #{attention_forward.7} parent=1 // pred_region
      _
    $region5: #{attention_forward.7} parent=1 // pred_fallthru
      _
    // Predicated region
    $region6: #{attention_forward.7} parent=1 // pred_check
      _
    $region7: #{attention_forward.7} parent=1 // pred_check_branch
      %12 = sbr.rel (0) target = $region9
    $region8: #{attention_forward.7} parent=1 // pred_region
      _
    $region9: #{attention_forward.7} parent=1 // pred_fallthru
      _
    // Predicated region
    $region10: #{attention_forward.7} parent=1 // pred_check
      _
    $region11: #{attention_forward.7} parent=1 // pred_check_branch
      %14 = sbr.rel (0) target = $region13
    $region12: #{attention_forward.7} parent=1 // pred_region
      _
    $region13: #{attention_forward.7} parent=1 // pred_fallthru
      _
    %p15 = scmp.eq.s32.totalorder 0, 0
    // Predicated region
    $region14: #{attention_forward.7} parent=1 // pred_check
      %p16 = pneg %p15
    $region15: #{attention_forward.7} parent=1 // pred_check_branch
      %18 = sbr.rel (%p16) target = $region17
    $region16: #{attention_forward.7} parent=1 // pred_region
      %vm19 = vcmask 261120
      %20 = vst.msk [vmem:[#allocation2] sm:$0xff] %vm19, 0.0
      %21 = vst.msk [vmem:[#allocation2 + $0x8] sm:$0xff] %vm19, 0.0
    $region17: #{attention_forward.7} parent=1 // pred_fallthru
      _
    %v22 = vld [vmem:[#allocation2] sm:$0xff]
    %v23 = vld [vmem:[#allocation2 + $0x8] sm:$0xff]
    %v24 = vld [vmem:[%s0] sm:$0xff]
    %v25 = vld [vmem:[%s0 + $0x8] sm:$0xff]
    %v26 = vld [vmem:[%s1] sm:$0xff]
    %v27 = vld [vmem:[%s1 + $0x8] sm:$0xff]
    %v28 = vld [vmem:[%s1 + $0x10] sm:$0xff]
    %v29 = vld [vmem:[%s1 + $0x18] sm:$0xff]
    %v30 = vld [vmem:[%s1 + $0x20] sm:$0xff]
    %v31 = vld [vmem:[%s1 + $0x28] sm:$0xff]
    %v32 = vld [vmem:[%s1 + $0x30] sm:$0xff]
    %v33 = vld [vmem:[%s1 + $0x38] sm:$0xff]
    %v34 = vld [vmem:[%s1 + $0x40] sm:$0xff]
    %v35 = vld [vmem:[%s1 + $0x48] sm:$0xff]
    %v36 = vld [vmem:[%s1 + $0x50] sm:$0xff]
    %v37 = vld [vmem:[%s1 + $0x58] sm:$0xff]
    %v38 = vld [vmem:[%s1 + $0x60] sm:$0xff]
    %v39 = vld [vmem:[%s1 + $0x68] sm:$0xff]
    %v40 = vld [vmem:[%s1 + $0x70] sm:$0xff]
    %v41 = vld [vmem:[%s1 + $0x78] sm:$0xff]
    %42 = vmatprep.subr.mxu0 0.0
    %43 = vmatpush1.msra.mxu0 %v26
    %44 = vmatprep.subr.mxu0 0.0
    %45 = vmatpush1.msra.mxu0 %v27
    %46 = vmatprep.subr.mxu0 0.0
    %47 = vmatpush1.msra.mxu0 %v28
    %48 = vmatprep.subr.mxu0 0.0
    %49 = vmatpush1.msra.mxu0 %v29
    %50 = vmatprep.subr.mxu0 0.0
    %51 = vmatpush1.msra.mxu0 %v30
    %52 = vmatprep.subr.mxu0 0.0
    %53 = vmatpush1.msra.mxu0 %v31
    %54 = vmatprep.subr.mxu0 0.0
    %55 = vmatpush1.msra.mxu0 %v32
    %56 = vmatprep.subr.mxu0 0.0
    %57 = vmatpush1.msra.mxu0 %v33
    %58 = vmatprep.subr.mxu0 0.0
    %59 = vmatpush1.msra.mxu0 %v34
    %60 = vmatprep.subr.mxu0 0.0
    %61 = vmatpush1.msra.mxu0 %v35
    %62 = vmatprep.subr.mxu0 0.0
    %63 = vmatpush1.msra.mxu0 %v36
    %64 = vmatprep.subr.mxu0 0.0
    %65 = vmatpush1.msra.mxu0 %v37
    %66 = vmatprep.subr.mxu0 0.0
    %67 = vmatpush1.msra.mxu0 %v38
    %68 = vmatprep.subr.mxu0 0.0
    %69 = vmatpush1.msra.mxu0 %v39
    %70 = vmatprep.subr.mxu0 0.0
    %71 = vmatpush1.msra.mxu0 %v40
    %72 = vmatprep.subr.mxu0 0.0
    %73 = vmatpush1.msra.mxu0 %v41
    %74 = vmatprep.subr.mxu0 0.0
    %75 = vmatpush1.msra.mxu0 0.0
    %76 = vmatprep.subr.mxu0 0.0
    %77 = vmatpush1.msra.mxu0 0.0
    %78 = vmatprep.subr.mxu0 0.0
    %79 = vmatpush1.msra.mxu0 0.0
    %80 = vmatprep.subr.mxu0 0.0
    %81 = vmatpush1.msra.mxu0 0.0
    %82 = vmatprep.subr.mxu0 0.0
    %83 = vmatpush1.msra.mxu0 0.0
    %84 = vmatprep.subr.mxu0 0.0
    %85 = vmatpush1.msra.mxu0 0.0
    %86 = vmatprep.subr.mxu0 0.0
    %87 = vmatpush1.msra.mxu0 0.0
    %88 = vmatprep.subr.mxu0 0.0
    %89 = vmatpush1.msra.mxu0 0.0
    %90 = vmatprep.subr.mxu0 0.0
    %91 = vmatpush1.msra.mxu0 0.0
    %92 = vmatprep.subr.mxu0 0.0
    %93 = vmatpush1.msra.mxu0 0.0
    %94 = vmatprep.subr.mxu0 0.0
    %95 = vmatpush1.msra.mxu0 0.0
    %96 = vmatprep.subr.mxu0 0.0
    %97 = vmatpush1.msra.mxu0 0.0
    %98 = vmatprep.subr.mxu0 0.0
    %99 = vmatpush1.msra.mxu0 0.0
    %100 = vmatprep.subr.mxu0 0.0
    %101 = vmatpush1.msra.mxu0 0.0
    %102 = vmatprep.subr.mxu0 0.0
    %103 = vmatpush1.msra.mxu0 0.0
    %104 = vmatprep.subr.mxu0 0.0
    %105 = vmatpush1.msra.mxu0 0.0
    %106 = vmatprep.mubr.f32.mxu0 0.0
    %107 = vmatmul.mubr.f32.gmra.mrb[0].mxu0 %v24
    %v108 = vpop.f32.mrb[0].mxu0
    %v109 = vadd.f32 0.0, %v108
    %v110 = vpop.f32.mrb[0].mxu0
    %111 = vmatprep.mubr.f32.mxu0 0.0
    %112 = vmatmul.mubr.f32.gmra.mrb[0].mxu0 %v25
    %v113 = vpop.f32.mrb[0].mxu0
    %v114 = vadd.f32 0.0, %v113
    %v115 = vpop.f32.mrb[0].mxu0
    %116 = vdwg.mxu0
    %v117 = vadd.f32 %v22, %v109
    %v118 = vadd.f32 %v23, %v114
    %vm119 = vcmask 261120
    %120 = vst.msk [vmem:[#allocation2] sm:$0xff] %vm119, %v117
    %121 = vst.msk [vmem:[#allocation2 + $0x8] sm:$0xff] %vm119, %v118
    // Predicated region
    $region18: #{attention_forward.7} parent=1 // pred_check
      %p122 = pneg %p15
    $region19: #{attention_forward.7} parent=1 // pred_check_branch
      %124 = sbr.rel (%p122) target = $region21
    $region20: #{attention_forward.7} parent=1 // pred_region
      %v125 = vld [vmem:[#allocation2] sm:$0xff]
      %v126 = vld [vmem:[#allocation2 + $0x8] sm:$0xff]
      %v127 = vld [vmem:[%s2] sm:$0x1]
      %v129 = vlaneseq
      %v130 = vshrl.u32 %v129, 7
      %v131 = vsub.s32 0, %v130
      %v132 = vrot.slane %v127, %v131
      %v134 = vadd.f32 %v125, %v132
      %v135 = vadd.f32 %v126, %v132
      %136 = vst.msk [vmem:[#allocation3] sm:$0xff] %vm119, %v134
      %137 = vst.msk [vmem:[#allocation3 + $0x8] sm:$0xff] %vm119, %v135
    $region21: #{attention_forward.7} parent=1 // pred_fallthru
      _
    // Predicated region
    $region22: #{attention_forward.7} parent=1 // pred_check
      _
    $region23: #{attention_forward.7} parent=1 // pred_check_branch
      %139 = sbr.rel (0) target = $region25
    $region24: #{attention_forward.7} parent=1 // pred_region
      %s141 = ssub.s32 256, 256
      %142 = vsyncadd [#allocation4], %s141
      %s143 = sshll.u32 [#allocation3], 4
      %s144 = int_to_ptr.vmem [resolvable:$true] %s143
      %149 = dma.vmem_to_hbm [thread:$0]  %s144, 256, %s3, [#allocation4], 128, 128, 8
    $region25: #{attention_forward.7} parent=1 // pred_fallthru
      _
    // Predicated region
    $region26: #{attention_forward.7} parent=1 // pred_check
      _
    $region27: #{attention_forward.7} parent=1 // pred_check_branch
      %151 = sbr.rel (0) target = $region29
    $region28: #{attention_forward.7} parent=1 // pred_region
      %152 = dma.done [#allocation4], 256
    $region29: #{attention_forward.7} parent=1 // pred_fallthru
      _
    %153 = vsyncpa [#allocation4], 1

// kernel: attention_forward.6
$region0: #{attention_forward.6}
  #allocation0 [shape = 'u32[]', space=smem, size = 0x4, offset = 0x4, fixed_abs, tag = 'smem constant byte address 0x4 - core index']
  #allocation1 [shape = 'u32[144,128]{1,0:T(1,128)}', space=vmem, size = 0x12000, scoped, tag = 'internal scratch']
  #allocation2 [shape = 'f32[4,8,1]{2,1,0:T(8,128)}', space=vmem, size = 0x4000, scoped, tag = 'scratch operand']
  #allocation3 [shape = 'f32[4,8,1]{2,1,0:T(8,128)}', space=vmem, size = 0x4000, scoped, tag = 'scratch operand']
  #allocation4 [shape = 'f32[4,8,32]{2,1,0:T(8,128)}', space=vmem, size = 0x4000, scoped, tag = 'scratch operand']
  %s0 = inlined_call_operand.vmem [shape: f32[2,8,128], index: 0, kind: input, shape index: {}]
  %s1 = inlined_call_operand.vmem [shape: f32[2,8,256], index: 1, kind: input, shape index: {}, may-alias: {1,2}]
  %s2 = inlined_call_operand.vmem [shape: f32[2,8,256], index: 2, kind: input, shape index: {}, may-alias: {1,2}]
  %s3 = inlined_call_operand.vmem [shape: f32[2,8,128], index: 3, kind: output, shape index: {}]
  %s4 = sld [smem:[#allocation0]]
  $region53: #{attention_forward.6} parent=0
    _
  %s6 = ssub.s32 1, %s4
  %s7 = scalar_select 0, %s6, %s4
  loop: start=0, step=1, limit=4
  $region2: #{attention_forward.6} parent=0 // loop_pre_header
    _
  $region3: #{attention_forward.6} parent=0 // loop_header
    %s9 = sphi 0, %s13
    %p10 = scmp.ge.s32.totalorder %s9, 4
    %s16 = sphi 0, %s42
    %s17 = sphi 0, %s38
    %s18 = sphi 0, %s34
    %s19 = sphi 0, %s30
    %s20 = sphi 0, %s16
    %s21 = sphi 0, %s17
    %s22 = sphi 0, %s18
    %s23 = sphi 0, %s19
    %s24 = sphi 0, %s20
    %s25 = sphi 0, %s21
    %s26 = sphi 0, %s22
    %s27 = sphi 0, %s23
    %s49 = sphi 0, %s51
    %s52 = sphi 0, %s49
    %s53 = sphi 0, %s52
    %s69 = sphi 0, %s53
    %s79 = sphi 0, %s81
    %s82 = sphi 0, %s79
    %s83 = sphi 0, %s82
    %s99 = sphi 0, %s83
    %s111 = sphi 0, %s113
    %s114 = sphi 0, %s111
    %s115 = sphi 0, %s114
    %s131 = sphi 0, %s115
    %s141 = sphi 0, %s143
    %s144 = sphi 0, %s141
    %s145 = sphi 0, %s144
    %s161 = sphi 0, %s145
  $region4: #{attention_forward.6} parent=0 // loop_header_branch
    %12 = sbr.rel (%p10) target = $region8
  $region5: #{attention_forward.6} parent=0 // loop_body
    %s14 = ssub.s32 %s9, 1
    %s15 = ssub.s32 %s9, 2
    %s28 = sadd.s32 1, %s19
    %p29 = scmp.ge.s32.totalorder %s28, 1
    %s30 = scalar_select %p29, 0, %s28
    %s31 = sadd.s32 1, %s18
    %s32 = scalar_select %p29, %s31, %s18
    %p33 = scmp.ge.s32.totalorder %s32, 1
    %s34 = scalar_select %p33, 0, %s32
    %s35 = sadd.s32 1, %s17
    %s36 = scalar_select %p33, %s35, %s17
    %p37 = scmp.ge.s32.totalorder %s36, 1
    %s38 = scalar_select %p37, 0, %s36
    %s39 = sadd.s32 1, %s16
    %s40 = scalar_select %p37, %s39, %s16
    %p41 = scmp.ge.s32.totalorder %s40, 2
    %s42 = scalar_select %p41, 0, %s40
    %s43 = ssub.s32 %s16, %s42
    %s44 = ssub.s32 %s18, %s34
    %s45 = sor.u32 %s43, %s44
    %s46 = ssub.s32 %s17, %s38
    %s47 = sor.u32 %s45, %s46
    %p48 = scmp.eq.s32.totalorder %s47, 0
    %s50 = sadd.s32 %s49, 1
    %s51 = scalar_select %p48, %s49, %s50
    %p54 = pneg %p48
    %p55 = scmp.eq.s32.totalorder %s9, 1
    %p56 = por %p54, %p55
    %p57 = scmp.ne.s32.totalorder %s49, %s52
    %p58 = scmp.eq.s32.totalorder %s9, 0
    %p59 = por %p57, %p58
    %p60 = scmp.ne.s32.totalorder %s49, %s52
    %p61 = scmp.eq.s32.totalorder %s14, 1
    %p62 = por %p60, %p61
    %p63 = scmp.ne.s32.totalorder %s52, %s53
    %p64 = scmp.eq.s32.totalorder %s14, 0
    %p65 = por %p63, %p64
    %p66 = scmp.ne.s32.totalorder %s52, %s53
    %p67 = scmp.eq.s32.totalorder %s15, 1
    %p68 = por %p66, %p67
    %p70 = scmp.ne.s32.totalorder %s53, %s69
    %p71 = scmp.eq.s32.totalorder %s15, 0
    %p72 = por %p70, %p71
    %s73 = ssub.s32 %s16, %s42
    %s74 = ssub.s32 %s19, %s30
    %s75 = sor.u32 %s73, %s74
    %s76 = ssub.s32 %s17, %s38
    %s77 = sor.u32 %s75, %s76
    %p78 = scmp.eq.s32.totalorder %s77, 0
    %s80 = sadd.s32 %s79, 1
    %s81 = scalar_select %p78, %s79, %s80
    %p84 = pneg %p78
    %p85 = scmp.eq.s32.totalorder %s9, 1
    %p86 = por %p84, %p85
    %p87 = scmp.ne.s32.totalorder %s79, %s82
    %p88 = scmp.eq.s32.totalorder %s9, 0
    %p89 = por %p87, %p88
    %p90 = scmp.ne.s32.totalorder %s79, %s82
    %p91 = scmp.eq.s32.totalorder %s14, 1
    %p92 = por %p90, %p91
    %p93 = scmp.ne.s32.totalorder %s82, %s83
    %p94 = scmp.eq.s32.totalorder %s14, 0
    %p95 = por %p93, %p94
    %p96 = scmp.ne.s32.totalorder %s82, %s83
    %p97 = scmp.eq.s32.totalorder %s15, 1
    %p98 = por %p96, %p97
    %p100 = scmp.ne.s32.totalorder %s83, %s99
    %p101 = scmp.eq.s32.totalorder %s15, 0
    %p102 = por %p100, %p101
    %s103 = sadd.s32 %s17, 1
    %s104 = sadd.s32 %s38, 1
    %s105 = ssub.s32 %s16, %s42
    %s106 = ssub.s32 %s19, %s30
    %s107 = sor.u32 %s105, %s106
    %s108 = ssub.s32 %s103, %s104
    %s109 = sor.u32 %s107, %s108
    %p110 = scmp.eq.s32.totalorder %s109, 0
    %s112 = sadd.s32 %s111, 1
    %s113 = scalar_select %p110, %s111, %s112
    %p116 = pneg %p110
    %p117 = scmp.eq.s32.totalorder %s9, 1
    %p118 = por %p116, %p117
    %p119 = scmp.ne.s32.totalorder %s111, %s114
    %p120 = scmp.eq.s32.totalorder %s9, 0
    %p121 = por %p119, %p120
    %p122 = scmp.ne.s32.totalorder %s111, %s114
    %p123 = scmp.eq.s32.totalorder %s14, 1
    %p124 = por %p122, %p123
    %p125 = scmp.ne.s32.totalorder %s114, %s115
    %p126 = scmp.eq.s32.totalorder %s14, 0
    %p127 = por %p125, %p126
    %p128 = scmp.ne.s32.totalorder %s114, %s115
    %p129 = scmp.eq.s32.totalorder %s15, 1
    %p130 = por %p128, %p129
    %p132 = scmp.ne.s32.totalorder %s115, %s131
    %p133 = scmp.eq.s32.totalorder %s15, 0
    %p134 = por %p132, %p133
    %s135 = ssub.s32 %s16, %s42
    %s136 = ssub.s32 %s18, %s34
    %s137 = sor.u32 %s135, %s136
    %s138 = ssub.s32 %s17, %s38
    %s139 = sor.u32 %s137, %s138
    %p140 = scmp.eq.s32.totalorder %s139, 0
    %s142 = sadd.s32 %s141, 1
    %s143 = scalar_select %p140, %s141, %s142
    %p146 = pneg %p140
    %p147 = scmp.eq.s32.totalorder %s9, 1
    %p148 = por %p146, %p147
    %p149 = scmp.ne.s32.totalorder %s141, %s144
    %p150 = scmp.eq.s32.totalorder %s9, 0
    %p151 = por %p149, %p150
    %p152 = scmp.ne.s32.totalorder %s141, %s144
    %p153 = scmp.eq.s32.totalorder %s14, 1
    %p154 = por %p152, %p153
    %p155 = scmp.ne.s32.totalorder %s144, %s145
    %p156 = scmp.eq.s32.totalorder %s14, 0
    %p157 = por %p155, %p156
    %p158 = scmp.ne.s32.totalorder %s144, %s145
    %p159 = scmp.eq.s32.totalorder %s15, 1
    %p160 = por %p158, %p159
    %p162 = scmp.ne.s32.totalorder %s145, %s161
    %p163 = scmp.eq.s32.totalorder %s15, 0
    %p164 = por %p162, %p163
    %p165 = scmp.le.s32.totalorder 1, %s9
    %p166 = scmp.lt.s32.totalorder %s9, 3
    %p167 = pnand %p165, %p166
    %p168 = pneg %p167
    // Predicated region
    $region9: #{attention_forward.6} parent=5 // pred_check
      _
    $region10: #{attention_forward.6} parent=5 // pred_check_branch
      %170 = sbr.rel (%p167) target = $region12
    $region11: #{attention_forward.6} parent=5 // pred_region
      %s171 = ssub.s32 %s9, 1
    $region12: #{attention_forward.6} parent=5 // pred_fallthru
      _
    %p172 = scmp.lt.s32.totalorder %s9, 2
    // Predicated region
    $region13: #{attention_forward.6} parent=5 // pred_check
      %p173 = pneg %p172
    $region14: #{attention_forward.6} parent=5 // pred_check_branch
      %175 = sbr.rel (%p173) target = $region16
    $region15: #{attention_forward.6} parent=5 // pred_region
      // Predicated region
      $region17: #{attention_forward.6} parent=15 // pred_check
        %p176 = pneg %p59
      $region18: #{attention_forward.6} parent=15 // pred_check_branch
        %178 = sbr.rel (%p176) target = $region20
      $region19: #{attention_forward.6} parent=15 // pred_region
        %p179 = scmp.lt.s32.totalorder %s16, 1
        %s180 = scalar_select %p179, %s16, 1
        %p181 = scmp.lt.s32.totalorder %s18, 0
        %s182 = scalar_select %p181, %s18, 0
        %p183 = scmp.lt.s32.totalorder %s17, 0
        %s184 = scalar_select %p183, %s17, 0
        %s185 = sadd.s32 %s184, %s182
        %s186 = sadd.s32 %s185, %s180
        %s187 = smul.addr %s186, 8
        %s188 = scalar_lea.vmem %s0, %s187
      $region20: #{attention_forward.6} parent=15 // pred_fallthru
        _
      // Predicated region
      $region21: #{attention_forward.6} parent=15 // pred_check
        %p189 = pneg %p89
      $region22: #{attention_forward.6} parent=15 // pred_check_branch
        %191 = sbr.rel (%p189) target = $region24
      $region23: #{attention_forward.6} parent=15 // pred_region
        %p192 = scmp.lt.s32.totalorder %s16, 1
        %s193 = scalar_select %p192, %s16, 1
        %p194 = scmp.lt.s32.totalorder %s19, 0
        %s195 = scalar_select %p194, %s19, 0
        %p196 = scmp.lt.s32.totalorder %s17, 1
        %s197 = scalar_select %p196, %s17, 1
        %s198 = smul.addr %s195, 2
        %s199 = sadd.s32 %s197, %s198
        %s200 = smul.addr %s193, 2
        %s201 = sadd.s32 %s199, %s200
        %s202 = smul.addr %s201, 8
        %s203 = scalar_lea.vmem %s1, %s202
      $region24: #{attention_forward.6} parent=15 // pred_fallthru
        _
      // Predicated region
      $region25: #{attention_forward.6} parent=15 // pred_check
        %p204 = pneg %p121
      $region26: #{attention_forward.6} parent=15 // pred_check_branch
        %206 = sbr.rel (%p204) target = $region28
      $region27: #{attention_forward.6} parent=15 // pred_region
        %s207 = sadd.s32 %s17, 1
        %p208 = scmp.lt.s32.totalorder %s16, 1
        %s209 = scalar_select %p208, %s16, 1
        %p210 = scmp.lt.s32.totalorder %s19, 0
        %s211 = scalar_select %p210, %s19, 0
        %p212 = scmp.lt.s32.totalorder %s207, 1
        %s213 = scalar_select %p212, %s207, 1
        %s214 = smul.addr %s211, 2
        %s215 = sadd.s32 %s213, %s214
        %s216 = smul.addr %s209, 2
        %s217 = sadd.s32 %s215, %s216
        %s218 = smul.addr %s217, 8
        %s219 = scalar_lea.vmem %s2, %s218
        %s220 = sadd.s32 %s17, 1
      $region28: #{attention_forward.6} parent=15 // pred_fallthru
        _
    $region16: #{attention_forward.6} parent=5 // pred_fallthru
      _
    %p221 = scmp.le.s32.totalorder 1, %s9
    %p222 = scmp.lt.s32.totalorder %s9, 3
    %p223 = pnand %p221, %p222
    %p224 = pneg %p223
    // Predicated region
    $region29: #{attention_forward.6} parent=5 // pred_check
      _
    $region30: #{attention_forward.6} parent=5 // pred_check_branch
      %226 = sbr.rel (%p223) target = $region32
    $region31: #{attention_forward.6} parent=5 // pred_region
      %s227 = ssub.s32 %s9, 1
      %p228 = scmp.lt.s32.totalorder %s20, 1
      %s229 = scalar_select %p228, %s20, 1
      %p230 = scmp.lt.s32.totalorder %s22, 0
      %s231 = scalar_select %p230, %s22, 0
      %p232 = scmp.lt.s32.totalorder %s21, 0
      %s233 = scalar_select %p232, %s21, 0
      %s234 = sadd.s32 %s233, %s231
      %s235 = sadd.s32 %s234, %s229
      %s236 = smul.addr %s235, 8
      %s237 = scalar_lea.vmem %s0, %s236
      %p238 = pneg %p65
      %p239 = pneg %p62
      %p240 = scmp.lt.s32.totalorder %s20, 1
      %s241 = scalar_select %p240, %s20, 1
      %p242 = scmp.lt.s32.totalorder %s23, 0
      %s243 = scalar_select %p242, %s23, 0
      %p244 = scmp.lt.s32.totalorder %s21, 1
      %s245 = scalar_select %p244, %s21, 1
      %s246 = smul.addr %s243, 2
      %s247 = sadd.s32 %s245, %s246
      %s248 = smul.addr %s241, 2
      %s249 = sadd.s32 %s247, %s248
      %s250 = smul.addr %s249, 8
      %s251 = scalar_lea.vmem %s1, %s250
      %p252 = pneg %p95
      %p253 = pneg %p92
      %s254 = sadd.s32 %s21, 1
      %p255 = scmp.lt.s32.totalorder %s20, 1
      %s256 = scalar_select %p255, %s20, 1
      %p257 = scmp.lt.s32.totalorder %s23, 0
      %s258 = scalar_select %p257, %s23, 0
      %p259 = scmp.lt.s32.totalorder %s254, 1
      %s260 = scalar_select %p259, %s254, 1
      %s261 = smul.addr %s258, 2
      %s262 = sadd.s32 %s260, %s261
      %s263 = smul.addr %s256, 2
      %s264 = sadd.s32 %s262, %s263
      %s265 = smul.addr %s264, 8
      %s266 = scalar_lea.vmem %s2, %s265
      %p267 = pneg %p127
      %p268 = pneg %p124
      %p269 = pneg %p157
      %p270 = pneg %p154
      %p271 = scmp.lt.s32.totalorder %s20, 1
      %s272 = scalar_select %p271, %s20, 1
      %p273 = scmp.lt.s32.totalorder %s22, 0
      %s274 = scalar_select %p273, %s22, 0
      %p275 = scmp.lt.s32.totalorder %s21, 0
      %s276 = scalar_select %p275, %s21, 0
      %s277 = sadd.s32 %s276, %s274
      %s278 = sadd.s32 %s277, %s272
      %s279 = smul.addr %s278, 8
      %s280 = scalar_lea.vmem %s3, %s279
      %p281 = scmp.lt.s32.totalorder %s20, 1
      %s282 = scalar_select %p281, %s20, 1
      %p283 = scmp.lt.s32.totalorder %s22, 0
      %s284 = scalar_select %p283, %s22, 0
      %p285 = scmp.lt.s32.totalorder %s21, 0
      %s286 = scalar_select %p285, %s21, 0
      %s287 = sadd.s32 %s286, %s284
      %s288 = sadd.s32 %s287, %s282
      %s289 = smul.addr %s288, 8
      %s290 = scalar_lea.vmem %s0, %s289
      %p291 = scmp.lt.s32.totalorder %s20, 1
      %s292 = scalar_select %p291, %s20, 1
      %p293 = scmp.lt.s32.totalorder %s23, 0
      %s294 = scalar_select %p293, %s23, 0
      %p295 = scmp.lt.s32.totalorder %s21, 1
      %s296 = scalar_select %p295, %s21, 1
      %s297 = smul.addr %s294, 2
      %s298 = sadd.s32 %s296, %s297
      %s299 = smul.addr %s292, 2
      %s300 = sadd.s32 %s298, %s299
      %s301 = smul.addr %s300, 8
      %s302 = scalar_lea.vmem %s1, %s301
      %s303 = sadd.s32 %s21, 1
      %p304 = scmp.lt.s32.totalorder %s20, 1
      %s305 = scalar_select %p304, %s20, 1
      %p306 = scmp.lt.s32.totalorder %s23, 0
      %s307 = scalar_select %p306, %s23, 0
      %p308 = scmp.lt.s32.totalorder %s303, 1
      %s309 = scalar_select %p308, %s303, 1
      %s310 = smul.addr %s307, 2
      %s311 = sadd.s32 %s309, %s310
      %s312 = smul.addr %s305, 2
      %s313 = sadd.s32 %s311, %s312
      %s314 = smul.addr %s313, 8
      %s315 = scalar_lea.vmem %s2, %s314
      %s316 = sadd.s32 %s21, 1
      %p317 = scmp.lt.s32.totalorder %s20, 1
      %s318 = scalar_select %p317, %s20, 1
      %p319 = scmp.lt.s32.totalorder %s22, 0
      %s320 = scalar_select %p319, %s22, 0
      %p321 = scmp.lt.s32.totalorder %s21, 0
      %s322 = scalar_select %p321, %s21, 0
      %s323 = sadd.s32 %s322, %s320
      %s324 = sadd.s32 %s323, %s318
      %s325 = smul.addr %s324, 8
      %s326 = scalar_lea.vmem %s3, %s325
      %p327 = scmp.eq.s32.totalorder %s23, 0
      // Predicated region
      $region33: #{attention_forward.6} parent=31 // pred_check
        %p328 = pneg %p327
      $region34: #{attention_forward.6} parent=31 // pred_check_branch
        %330 = sbr.rel (%p328) target = $region36
      $region35: #{attention_forward.6} parent=31 // pred_region
        %vm331 = vcmask 7168
        %332 = vst.msk [vmem:[#allocation2] sm:$0xff] %vm331, -inf
        %333 = vst.msk [vmem:[#allocation2 + $0x8] sm:$0xff] %vm331, -inf
        %334 = vst.msk [vmem:[#allocation2 + $0x10] sm:$0xff] %vm331, -inf
        %335 = vst.msk [vmem:[#allocation2 + $0x18] sm:$0xff] %vm331, -inf
        %336 = vst.msk [vmem:[#allocation3] sm:$0xff] %vm331, 0.0
        %337 = vst.msk [vmem:[#allocation3 + $0x8] sm:$0xff] %vm331, 0.0
        %338 = vst.msk [vmem:[#allocation3 + $0x10] sm:$0xff] %vm331, 0.0
        %339 = vst.msk [vmem:[#allocation3 + $0x18] sm:$0xff] %vm331, 0.0
        %vm340 = vcmask 261120
        %341 = vst.msk [vmem:[#allocation4] sm:$0xff] %vm340, 0.0
        %342 = vst.msk [vmem:[#allocation4 + $0x8] sm:$0xff] %vm340, 0.0
        %343 = vst.msk [vmem:[#allocation4 + $0x10] sm:$0xff] %vm340, 0.0
        %344 = vst.msk [vmem:[#allocation4 + $0x18] sm:$0xff] %vm340, 0.0
      $region36: #{attention_forward.6} parent=31 // pred_fallthru
        _
      %v345 = vld [vmem:[%s290] sm:$0xff]
      %v346 = vmul.f32 %v345, 0.17677669
      %v347 = vld [vmem:[%s302] sm:$0xff]
      %v348 = vld [vmem:[%s315] sm:$0xff]
      %vm349 = vcmask 261120
      %v351 = vsel %vm349, %v346, 0
      %v354 = vsel %vm349, %v347, 0
      %356 = vmatprep.subr.mxu0 0.0
      %357 = vmatpush1.xpose.msra.mxu0 %v354
      %358 = vmatprep.subr.mxu0 0.0
      %359 = vmatpush1.xpose.msra.mxu0 0.0
      %360 = vmatprep.subr.mxu0 0.0
      %361 = vmatpush1.xpose.msra.mxu0 0.0
      %362 = vmatprep.subr.mxu0 0.0
      %363 = vmatpush1.xpose.msra.mxu0 0.0
      %364 = vmatprep.subr.mxu0 0.0
      %365 = vmatpush1.xpose.msra.mxu0 0.0
      %366 = vmatprep.subr.mxu0 0.0
      %367 = vmatpush1.xpose.msra.mxu0 0.0
      %368 = vmatprep.subr.mxu0 0.0
      %369 = vmatpush1.xpose.msra.mxu0 0.0
      %370 = vmatprep.subr.mxu0 0.0
      %371 = vmatpush1.xpose.msra.mxu0 0.0
      %372 = vmatprep.subr.mxu0 0.0
      %373 = vmatpush1.xpose.msra.mxu0 0.0
      %374 = vmatprep.subr.mxu0 0.0
      %375 = vmatpush1.xpose.msra.mxu0 0.0
      %376 = vmatprep.subr.mxu0 0.0
      %377 = vmatpush1.xpose.msra.mxu0 0.0
      %378 = vmatprep.subr.mxu0 0.0
      %379 = vmatpush1.xpose.msra.mxu0 0.0
      %380 = vmatprep.subr.mxu0 0.0
      %381 = vmatpush1.xpose.msra.mxu0 0.0
      %382 = vmatprep.subr.mxu0 0.0
      %383 = vmatpush1.xpose.msra.mxu0 0.0
      %384 = vmatprep.subr.mxu0 0.0
      %385 = vmatpush1.xpose.msra.mxu0 0.0
      %386 = vmatprep.subr.mxu0 0.0
      %387 = vmatpush1.xpose.msra.mxu0 0.0
      %388 = vmatprep.subr.mxu0 0.0
      %389 = vmatpush1.xpose.msra.mxu0 0.0
      %390 = vmatprep.subr.mxu0 0.0
      %391 = vmatpush1.xpose.msra.mxu0 0.0
      %392 = vmatprep.subr.mxu0 0.0
      %393 = vmatpush1.xpose.msra.mxu0 0.0
      %394 = vmatprep.subr.mxu0 0.0
      %395 = vmatpush1.xpose.msra.mxu0 0.0
      %396 = vmatprep.subr.mxu0 0.0
      %397 = vmatpush1.xpose.msra.mxu0 0.0
      %398 = vmatprep.subr.mxu0 0.0
      %399 = vmatpush1.xpose.msra.mxu0 0.0
      %400 = vmatprep.subr.mxu0 0.0
      %401 = vmatpush1.xpose.msra.mxu0 0.0
      %402 = vmatprep.subr.mxu0 0.0
      %403 = vmatpush1.xpose.msra.mxu0 0.0
      %404 = vmatprep.subr.mxu0 0.0
      %405 = vmatpush1.xpose.msra.mxu0 0.0
      %406 = vmatprep.subr.mxu0 0.0
      %407 = vmatpush1.xpose.msra.mxu0 0.0
      %408 = vmatprep.subr.mxu0 0.0
      %409 = vmatpush1.xpose.msra.mxu0 0.0
      %410 = vmatprep.subr.mxu0 0.0
      %411 = vmatpush1.xpose.msra.mxu0 0.0
      %412 = vmatprep.subr.mxu0 0.0
      %413 = vmatpush1.xpose.msra.mxu0 0.0
      %414 = vmatprep.subr.mxu0 0.0
      %415 = vmatpush1.xpose.msra.mxu0 0.0
      %416 = vmatprep.subr.mxu0 0.0
      %417 = vmatpush1.xpose.msra.mxu0 0.0
      %418 = vmatprep.subr.mxu0 0.0
      %419 = vmatpush1.xpose.msra.mxu0 0.0
      %420 = vmatprep.mubr.f32.mxu0 0.0
      %421 = vmatmul.mubr.f32.gmra.mrb[0].mxu0 %v351
      %v422 = vpop.f32.mrb[0].mxu0
      %v423 = vadd.f32 0.0, %v422
      %v424 = vpop.f32.mrb[0].mxu0
      %425 = vdwg.mxu0
      %v426 = vld [vmem:[#allocation2] sm:$0xff]
      %vm427 = vcmask 64512
      %v428 = vsel %vm427, %v423, -inf
      %429 = vmax.xlane.f32.xlu0 %v428
      %v430 = vpop.xlane.xlu0 %429
      %v431 = vmax.f32 %v426, %v430
      %v432 = vsub.f32 %v426, %v431
      %v433 = vmul.f32 %v432, 1.442695
      %v434 = vpow.pop %v433
      %436 = vset.pattern.permute.xlu0 0
      %437 = vperm.xlu0 %436, %v431
      %v438 = vpop.permute.xlu0 %437
      %v440 = vsub.f32 %v423, %v438
      %v441 = vmul.f32 %v440, 1.442695
      %v442 = vpow.pop %v441
      %v443 = vld [vmem:[#allocation3] sm:$0xff]
      %v444 = vmul.f32 %v434, %v443
      %v445 = vsel %vm427, %v442, 0.0
      %446 = vadd.xlane.f32.xlu0 %v445
      %v447 = vpop.xlane.xlu0 %446
      %v448 = vadd.f32 %v444, %v447
      %vm449 = vcmask 7168
      %450 = vst.msk [vmem:[#allocation3] sm:$0xff] %vm449, %v448
      %v451 = vld [vmem:[#allocation4] sm:$0xff]
      %453 = vset.pattern.permute.xlu0 0
      %454 = vperm.xlu0 %453, %v434
      %v455 = vpop.permute.xlu0 %454
      %v457 = vmul.f32 %v455, %v451
      %v459 = vsel %vm427, %v442, 0
      %461 = vmatprep.subr.mxu0 0.0
      %462 = vmatpush1.msra.mxu0 %v348
      %463 = vmatprep.subr.mxu0 0.0
      %464 = vmatpush1.msra.mxu0 0.0
      %465 = vmatprep.subr.mxu0 0.0
      %466 = vmatpush1.msra.mxu0 0.0
      %467 = vmatprep.subr.mxu0 0.0
      %468 = vmatpush1.msra.mxu0 0.0
      %469 = vmatprep.subr.mxu0 0.0
      %470 = vmatpush1.msra.mxu0 0.0
      %471 = vmatprep.subr.mxu0 0.0
      %472 = vmatpush1.msra.mxu0 0.0
      %473 = vmatprep.subr.mxu0 0.0
      %474 = vmatpush1.msra.mxu0 0.0
      %475 = vmatprep.subr.mxu0 0.0
      %476 = vmatpush1.msra.mxu0 0.0
      %477 = vmatprep.subr.mxu0 0.0
      %478 = vmatpush1.msra.mxu0 0.0
      %479 = vmatprep.subr.mxu0 0.0
      %480 = vmatpush1.msra.mxu0 0.0
      %481 = vmatprep.subr.mxu0 0.0
      %482 = vmatpush1.msra.mxu0 0.0
      %483 = vmatprep.subr.mxu0 0.0
      %484 = vmatpush1.msra.mxu0 0.0
      %485 = vmatprep.subr.mxu0 0.0
      %486 = vmatpush1.msra.mxu0 0.0
      %487 = vmatprep.subr.mxu0 0.0
      %488 = vmatpush1.msra.mxu0 0.0
      %489 = vmatprep.subr.mxu0 0.0
      %490 = vmatpush1.msra.mxu0 0.0
      %491 = vmatprep.subr.mxu0 0.0
      %492 = vmatpush1.msra.mxu0 0.0
      %493 = vmatprep.subr.mxu0 0.0
      %494 = vmatpush1.msra.mxu0 0.0
      %495 = vmatprep.subr.mxu0 0.0
      %496 = vmatpush1.msra.mxu0 0.0
      %497 = vmatprep.subr.mxu0 0.0
      %498 = vmatpush1.msra.mxu0 0.0
      %499 = vmatprep.subr.mxu0 0.0
      %500 = vmatpush1.msra.mxu0 0.0
      %501 = vmatprep.subr.mxu0 0.0
      %502 = vmatpush1.msra.mxu0 0.0
      %503 = vmatprep.subr.mxu0 0.0
      %504 = vmatpush1.msra.mxu0 0.0
      %505 = vmatprep.subr.mxu0 0.0
      %506 = vmatpush1.msra.mxu0 0.0
      %507 = vmatprep.subr.mxu0 0.0
      %508 = vmatpush1.msra.mxu0 0.0
      %509 = vmatprep.subr.mxu0 0.0
      %510 = vmatpush1.msra.mxu0 0.0
      %511 = vmatprep.subr.mxu0 0.0
      %512 = vmatpush1.msra.mxu0 0.0
      %513 = vmatprep.subr.mxu0 0.0
      %514 = vmatpush1.msra.mxu0 0.0
      %515 = vmatprep.subr.mxu0 0.0
      %516 = vmatpush1.msra.mxu0 0.0
      %517 = vmatprep.subr.mxu0 0.0
      %518 = vmatpush1.msra.mxu0 0.0
      %519 = vmatprep.subr.mxu0 0.0
      %520 = vmatpush1.msra.mxu0 0.0
      %521 = vmatprep.subr.mxu0 0.0
      %522 = vmatpush1.msra.mxu0 0.0
      %523 = vmatprep.subr.mxu0 0.0
      %524 = vmatpush1.msra.mxu0 0.0
      %525 = vmatprep.mubr.f32.mxu0 0.0
      %526 = vmatmul.mubr.f32.gmra.mrb[0].mxu0 %v459
      %v527 = vpop.f32.mrb[0].mxu0
      %v528 = vadd.f32 0.0, %v527
      %v529 = vpop.f32.mrb[0].mxu0
      %530 = vdwg.mxu0
      %v531 = vadd.f32 %v457, %v528
      %532 = vst.msk [vmem:[#allocation4] sm:$0xff] %vm349, %v531
      %533 = vst.msk [vmem:[#allocation2] sm:$0xff] %vm449, %v431
      %v534 = vld [vmem:[%s290] sm:$0xff]
      %v535 = vmul.f32 %v534, 0.17677669
      %v536 = vld [vmem:[%s302] sm:$0xff]
      %v537 = vld [vmem:[%s315] sm:$0xff]
      %539 = vrot.lane.b32.xlu0 %v535, 96
      %v540 = vpop.permute.xlu0 %539
      %542 = vrot.lane.b32.xlu0 %v536, 96
      %v543 = vpop.permute.xlu0 %542
      %v544 = vsel %vm349, %v540, 0
      %v546 = vsel %vm349, %v543, 0
      %548 = vmatprep.subr.mxu0 0.0
      %549 = vmatpush1.xpose.msra.mxu0 %v546
      %550 = vmatprep.subr.mxu0 0.0
      %551 = vmatpush1.xpose.msra.mxu0 0.0
      %552 = vmatprep.subr.mxu0 0.0
      %553 = vmatpush1.xpose.msra.mxu0 0.0
      %554 = vmatprep.subr.mxu0 0.0
      %555 = vmatpush1.xpose.msra.mxu0 0.0
      %556 = vmatprep.subr.mxu0 0.0
      %557 = vmatpush1.xpose.msra.mxu0 0.0
      %558 = vmatprep.subr.mxu0 0.0
      %559 = vmatpush1.xpose.msra.mxu0 0.0
      %560 = vmatprep.subr.mxu0 0.0
      %561 = vmatpush1.xpose.msra.mxu0 0.0
      %562 = vmatprep.subr.mxu0 0.0
      %563 = vmatpush1.xpose.msra.mxu0 0.0
      %564 = vmatprep.subr.mxu0 0.0
      %565 = vmatpush1.xpose.msra.mxu0 0.0
      %566 = vmatprep.subr.mxu0 0.0
      %567 = vmatpush1.xpose.msra.mxu0 0.0
      %568 = vmatprep.subr.mxu0 0.0
      %569 = vmatpush1.xpose.msra.mxu0 0.0
      %570 = vmatprep.subr.mxu0 0.0
      %571 = vmatpush1.xpose.msra.mxu0 0.0
      %572 = vmatprep.subr.mxu0 0.0
      %573 = vmatpush1.xpose.msra.mxu0 0.0
      %574 = vmatprep.subr.mxu0 0.0
      %575 = vmatpush1.xpose.msra.mxu0 0.0
      %576 = vmatprep.subr.mxu0 0.0
      %577 = vmatpush1.xpose.msra.mxu0 0.0
      %578 = vmatprep.subr.mxu0 0.0
      %579 = vmatpush1.xpose.msra.mxu0 0.0
      %580 = vmatprep.subr.mxu0 0.0
      %581 = vmatpush1.xpose.msra.mxu0 0.0
      %582 = vmatprep.subr.mxu0 0.0
      %583 = vmatpush1.xpose.msra.mxu0 0.0
      %584 = vmatprep.subr.mxu0 0.0
      %585 = vmatpush1.xpose.msra.mxu0 0.0
      %586 = vmatprep.subr.mxu0 0.0
      %587 = vmatpush1.xpose.msra.mxu0 0.0
      %588 = vmatprep.subr.mxu0 0.0
      %589 = vmatpush1.xpose.msra.mxu0 0.0
      %590 = vmatprep.subr.mxu0 0.0
      %591 = vmatpush1.xpose.msra.mxu0 0.0
      %592 = vmatprep.subr.mxu0 0.0
      %593 = vmatpush1.xpose.msra.mxu0 0.0
      %594 = vmatprep.subr.mxu0 0.0
      %595 = vmatpush1.xpose.msra.mxu0 0.0
      %596 = vmatprep.subr.mxu0 0.0
      %597 = vmatpush1.xpose.msra.mxu0 0.0
      %598 = vmatprep.subr.mxu0 0.0
      %599 = vmatpush1.xpose.msra.mxu0 0.0
      %600 = vmatprep.subr.mxu0 0.0
      %601 = vmatpush1.xpose.msra.mxu0 0.0
      %602 = vmatprep.subr.mxu0 0.0
      %603 = vmatpush1.xpose.msra.mxu0 0.0
      %604 = vmatprep.subr.mxu0 0.0
      %605 = vmatpush1.xpose.msra.mxu0 0.0
      %606 = vmatprep.subr.mxu0 0.0
      %607 = vmatpush1.xpose.msra.mxu0 0.0
      %608 = vmatprep.subr.mxu0 0.0
      %609 = vmatpush1.xpose.msra.mxu0 0.0
      %610 = vmatprep.subr.mxu0 0.0
      %611 = vmatpush1.xpose.msra.mxu0 0.0
      %612 = vmatprep.mubr.f32.mxu0 0.0
      %613 = vmatmul.mubr.f32.gmra.mrb[0].mxu0 %v544
      %v614 = vpop.f32.mrb[0].mxu0
      %v615 = vadd.f32 0.0, %v614
      %v616 = vpop.f32.mrb[0].mxu0
      %617 = vdwg.mxu0
      %s618 = scalar_lea.vmem [#allocation2], 8
      %v619 = vld [vmem:[%s618] sm:$0xff]
      %v620 = vsel %vm427, %v615, -inf
      %621 = vmax.xlane.f32.xlu0 %v620
      %v622 = vpop.xlane.xlu0 %621
      %v623 = vmax.f32 %v619, %v622
      %v624 = vsub.f32 %v619, %v623
      %v625 = vmul.f32 %v624, 1.442695
      %v626 = vpow.pop %v625
      %628 = vset.pattern.permute.xlu0 0
      %629 = vperm.xlu0 %628, %v623
      %v630 = vpop.permute.xlu0 %629
      %v632 = vsub.f32 %v615, %v630
      %v633 = vmul.f32 %v632, 1.442695
      %v634 = vpow.pop %v633
      %s635 = scalar_lea.vmem [#allocation3], 8
      %v636 = vld [vmem:[%s635] sm:$0xff]
      %v637 = vmul.f32 %v626, %v636
      %v638 = vsel %vm427, %v634, 0.0
      %639 = vadd.xlane.f32.xlu0 %v638
      %v640 = vpop.xlane.xlu0 %639
      %v641 = vadd.f32 %v637, %v640
      %642 = vst.msk [vmem:[%s635] sm:$0xff] %vm449, %v641
      %s643 = scalar_lea.vmem [#allocation4], 8
      %v644 = vld [vmem:[%s643] sm:$0xff]
      %646 = vset.pattern.permute.xlu0 0
      %647 = vperm.xlu0 %646, %v626
      %v648 = vpop.permute.xlu0 %647
      %v650 = vmul.f32 %v648, %v644
      %652 = vrot.lane.b32.xlu0 %v537, 96
      %v653 = vpop.permute.xlu0 %652
      %v656 = vsel %vm427, %v634, 0
      %658 = vmatprep.subr.mxu0 0.0
      %659 = vmatpush1.msra.mxu0 %v653
      %660 = vmatprep.subr.mxu0 0.0
      %661 = vmatpush1.msra.mxu0 0.0
      %662 = vmatprep.subr.mxu0 0.0
      %663 = vmatpush1.msra.mxu0 0.0
      %664 = vmatprep.subr.mxu0 0.0
      %665 = vmatpush1.msra.mxu0 0.0
      %666 = vmatprep.subr.mxu0 0.0
      %667 = vmatpush1.msra.mxu0 0.0
      %668 = vmatprep.subr.mxu0 0.0
      %669 = vmatpush1.msra.mxu0 0.0
      %670 = vmatprep.subr.mxu0 0.0
      %671 = vmatpush1.msra.mxu0 0.0
      %672 = vmatprep.subr.mxu0 0.0
      %673 = vmatpush1.msra.mxu0 0.0
      %674 = vmatprep.subr.mxu0 0.0
      %675 = vmatpush1.msra.mxu0 0.0
      %676 = vmatprep.subr.mxu0 0.0
      %677 = vmatpush1.msra.mxu0 0.0
      %678 = vmatprep.subr.mxu0 0.0
      %679 = vmatpush1.msra.mxu0 0.0
      %680 = vmatprep.subr.mxu0 0.0
      %681 = vmatpush1.msra.mxu0 0.0
      %682 = vmatprep.subr.mxu0 0.0
      %683 = vmatpush1.msra.mxu0 0.0
      %684 = vmatprep.subr.mxu0 0.0
      %685 = vmatpush1.msra.mxu0 0.0
      %686 = vmatprep.subr.mxu0 0.0
      %687 = vmatpush1.msra.mxu0 0.0
      %688 = vmatprep.subr.mxu0 0.0
      %689 = vmatpush1.msra.mxu0 0.0
      %690 = vmatprep.subr.mxu0 0.0
      %691 = vmatpush1.msra.mxu0 0.0
      %692 = vmatprep.subr.mxu0 0.0
      %693 = vmatpush1.msra.mxu0 0.0
      %694 = vmatprep.subr.mxu0 0.0
      %695 = vmatpush1.msra.mxu0 0.0
      %696 = vmatprep.subr.mxu0 0.0
      %697 = vmatpush1.msra.mxu0 0.0
      %698 = vmatprep.subr.mxu0 0.0
      %699 = vmatpush1.msra.mxu0 0.0
      %700 = vmatprep.subr.mxu0 0.0
      %701 = vmatpush1.msra.mxu0 0.0
      %702 = vmatprep.subr.mxu0 0.0
      %703 = vmatpush1.msra.mxu0 0.0
      %704 = vmatprep.subr.mxu0 0.0
      %705 = vmatpush1.msra.mxu0 0.0
      %706 = vmatprep.subr.mxu0 0.0
      %707 = vmatpush1.msra.mxu0 0.0
      %708 = vmatprep.subr.mxu0 0.0
      %709 = vmatpush1.msra.mxu0 0.0
      %710 = vmatprep.subr.mxu0 0.0
      %711 = vmatpush1.msra.mxu0 0.0
      %712 = vmatprep.subr.mxu0 0.0
      %713 = vmatpush1.msra.mxu0 0.0
      %714 = vmatprep.subr.mxu0 0.0
      %715 = vmatpush1.msra.mxu0 0.0
      %716 = vmatprep.subr.mxu0 0.0
      %717 = vmatpush1.msra.mxu0 0.0
      %718 = vmatprep.subr.mxu0 0.0
      %719 = vmatpush1.msra.mxu0 0.0
      %720 = vmatprep.subr.mxu0 0.0
      %721 = vmatpush1.msra.mxu0 0.0
      %722 = vmatprep.mubr.f32.mxu0 0.0
      %723 = vmatmul.mubr.f32.gmra.mrb[0].mxu0 %v656
      %v724 = vpop.f32.mrb[0].mxu0
      %v725 = vadd.f32 0.0, %v724
      %v726 = vpop.f32.mrb[0].mxu0
      %727 = vdwg.mxu0
      %v728 = vadd.f32 %v650, %v725
      %729 = vst.msk [vmem:[%s643] sm:$0xff] %vm349, %v728
      %730 = vst.msk [vmem:[%s618] sm:$0xff] %vm449, %v623
      %v731 = vld [vmem:[%s290] sm:$0xff]
      %v732 = vmul.f32 %v731, 0.17677669
      %v733 = vld [vmem:[%s302] sm:$0xff]
      %v734 = vld [vmem:[%s315] sm:$0xff]
      %736 = vrot.lane.b32.xlu0 %v732, 64
      %v737 = vpop.permute.xlu0 %736
      %739 = vrot.lane.b32.xlu0 %v733, 64
      %v740 = vpop.permute.xlu0 %739
      %v741 = vsel %vm349, %v737, 0
      %v743 = vsel %vm349, %v740, 0
      %745 = vmatprep.subr.mxu0 0.0
      %746 = vmatpush1.xpose.msra.mxu0 %v743
      %747 = vmatprep.subr.mxu0 0.0
      %748 = vmatpush1.xpose.msra.mxu0 0.0
      %749 = vmatprep.subr.mxu0 0.0
      %750 = vmatpush1.xpose.msra.mxu0 0.0
      %751 = vmatprep.subr.mxu0 0.0
      %752 = vmatpush1.xpose.msra.mxu0 0.0
      %753 = vmatprep.subr.mxu0 0.0
      %754 = vmatpush1.xpose.msra.mxu0 0.0
      %755 = vmatprep.subr.mxu0 0.0
      %756 = vmatpush1.xpose.msra.mxu0 0.0
      %757 = vmatprep.subr.mxu0 0.0
      %758 = vmatpush1.xpose.msra.mxu0 0.0
      %759 = vmatprep.subr.mxu0 0.0
      %760 = vmatpush1.xpose.msra.mxu0 0.0
      %761 = vmatprep.subr.mxu0 0.0
      %762 = vmatpush1.xpose.msra.mxu0 0.0
      %763 = vmatprep.subr.mxu0 0.0
      %764 = vmatpush1.xpose.msra.mxu0 0.0
      %765 = vmatprep.subr.mxu0 0.0
      %766 = vmatpush1.xpose.msra.mxu0 0.0
      %767 = vmatprep.subr.mxu0 0.0
      %768 = vmatpush1.xpose.msra.mxu0 0.0
      %769 = vmatprep.subr.mxu0 0.0
      %770 = vmatpush1.xpose.msra.mxu0 0.0
      %771 = vmatprep.subr.mxu0 0.0
      %772 = vmatpush1.xpose.msra.mxu0 0.0
      %773 = vmatprep.subr.mxu0 0.0
      %774 = vmatpush1.xpose.msra.mxu0 0.0
      %775 = vmatprep.subr.mxu0 0.0
      %776 = vmatpush1.xpose.msra.mxu0 0.0
      %777 = vmatprep.subr.mxu0 0.0
      %778 = vmatpush1.xpose.msra.mxu0 0.0
      %779 = vmatprep.subr.mxu0 0.0
      %780 = vmatpush1.xpose.msra.mxu0 0.0
      %781 = vmatprep.subr.mxu0 0.0
      %782 = vmatpush1.xpose.msra.mxu0 0.0
      %783 = vmatprep.subr.mxu0 0.0
      %784 = vmatpush1.xpose.msra.mxu0 0.0
      %785 = vmatprep.subr.mxu0 0.0
      %786 = vmatpush1.xpose.msra.mxu0 0.0
      %787 = vmatprep.subr.mxu0 0.0
      %788 = vmatpush1.xpose.msra.mxu0 0.0
      %789 = vmatprep.subr.mxu0 0.0
      %790 = vmatpush1.xpose.msra.mxu0 0.0
      %791 = vmatprep.subr.mxu0 0.0
      %792 = vmatpush1.xpose.msra.mxu0 0.0
      %793 = vmatprep.subr.mxu0 0.0
      %794 = vmatpush1.xpose.msra.mxu0 0.0
      %795 = vmatprep.subr.mxu0 0.0
      %796 = vmatpush1.xpose.msra.mxu0 0.0
      %797 = vmatprep.subr.mxu0 0.0
      %798 = vmatpush1.xpose.msra.mxu0 0.0
      %799 = vmatprep.subr.mxu0 0.0
      %800 = vmatpush1.xpose.msra.mxu0 0.0
      %801 = vmatprep.subr.mxu0 0.0
      %802 = vmatpush1.xpose.msra.mxu0 0.0
      %803 = vmatprep.subr.mxu0 0.0
      %804 = vmatpush1.xpose.msra.mxu0 0.0
      %805 = vmatprep.subr.mxu0 0.0
      %806 = vmatpush1.xpose.msra.mxu0 0.0
      %807 = vmatprep.subr.mxu0 0.0
      %808 = vmatpush1.xpose.msra.mxu0 0.0
      %809 = vmatprep.mubr.f32.mxu0 0.0
      %810 = vmatmul.mubr.f32.gmra.mrb[0].mxu0 %v741
      %v811 = vpop.f32.mrb[0].mxu0
      %v812 = vadd.f32 0.0, %v811
      %v813 = vpop.f32.mrb[0].mxu0
      %814 = vdwg.mxu0
      %s815 = scalar_lea.vmem [#allocation2], 16
      %v816 = vld [vmem:[%s815] sm:$0xff]
      %v817 = vsel %vm427, %v812, -inf
      %818 = vmax.xlane.f32.xlu0 %v817
      %v819 = vpop.xlane.xlu0 %818
      %v820 = vmax.f32 %v816, %v819
      %v821 = vsub.f32 %v816, %v820
      %v822 = vmul.f32 %v821, 1.442695
      %v823 = vpow.pop %v822
      %825 = vset.pattern.permute.xlu0 0
      %826 = vperm.xlu0 %825, %v820
      %v827 = vpop.permute.xlu0 %826
      %v829 = vsub.f32 %v812, %v827
      %v830 = vmul.f32 %v829, 1.442695
      %v831 = vpow.pop %v830
      %s832 = scalar_lea.vmem [#allocation3], 16
      %v833 = vld [vmem:[%s832] sm:$0xff]
      %v834 = vmul.f32 %v823, %v833
      %v835 = vsel %vm427, %v831, 0.0
      %836 = vadd.xlane.f32.xlu0 %v835
      %v837 = vpop.xlane.xlu0 %836
      %v838 = vadd.f32 %v834, %v837
      %839 = vst.msk [vmem:[%s832] sm:$0xff] %vm449, %v838
      %s840 = scalar_lea.vmem [#allocation4], 16
      %v841 = vld [vmem:[%s840] sm:$0xff]
      %843 = vset.pattern.permute.xlu0 0
      %844 = vperm.xlu0 %843, %v823
      %v845 = vpop.permute.xlu0 %844
      %v847 = vmul.f32 %v845, %v841
      %849 = vrot.lane.b32.xlu0 %v734, 64
      %v850 = vpop.permute.xlu0 %849
      %v853 = vsel %vm427, %v831, 0
      %855 = vmatprep.subr.mxu0 0.0
      %856 = vmatpush1.msra.mxu0 %v850
      %857 = vmatprep.subr.mxu0 0.0
      %858 = vmatpush1.msra.mxu0 0.0
      %859 = vmatprep.subr.mxu0 0.0
      %860 = vmatpush1.msra.mxu0 0.0
      %861 = vmatprep.subr.mxu0 0.0
      %862 = vmatpush1.msra.mxu0 0.0
      %863 = vmatprep.subr.mxu0 0.0
      %864 = vmatpush1.msra.mxu0 0.0
      %865 = vmatprep.subr.mxu0 0.0
      %866 = vmatpush1.msra.mxu0 0.0
      %867 = vmatprep.subr.mxu0 0.0
      %868 = vmatpush1.msra.mxu0 0.0
      %869 = vmatprep.subr.mxu0 0.0
      %870 = vmatpush1.msra.mxu0 0.0
      %871 = vmatprep.subr.mxu0 0.0
      %872 = vmatpush1.msra.mxu0 0.0
      %873 = vmatprep.subr.mxu0 0.0
      %874 = vmatpush1.msra.mxu0 0.0
      %875 = vmatprep.subr.mxu0 0.0
      %876 = vmatpush1.msra.mxu0 0.0
      %877 = vmatprep.subr.mxu0 0.0
      %878 = vmatpush1.msra.mxu0 0.0
      %879 = vmatprep.subr.mxu0 0.0
      %880 = vmatpush1.msra.mxu0 0.0
      %881 = vmatprep.subr.mxu0 0.0
      %882 = vmatpush1.msra.mxu0 0.0
      %883 = vmatprep.subr.mxu0 0.0
      %884 = vmatpush1.msra.mxu0 0.0
      %885 = vmatprep.subr.mxu0 0.0
      %886 = vmatpush1.msra.mxu0 0.0
      %887 = vmatprep.subr.mxu0 0.0
      %888 = vmatpush1.msra.mxu0 0.0
      %889 = vmatprep.subr.mxu0 0.0
      %890 = vmatpush1.msra.mxu0 0.0
      %891 = vmatprep.subr.mxu0 0.0
      %892 = vmatpush1.msra.mxu0 0.0
      %893 = vmatprep.subr.mxu0 0.0
      %894 = vmatpush1.msra.mxu0 0.0
      %895 = vmatprep.subr.mxu0 0.0
      %896 = vmatpush1.msra.mxu0 0.0
      %897 = vmatprep.subr.mxu0 0.0
      %898 = vmatpush1.msra.mxu0 0.0
      %899 = vmatprep.subr.mxu0 0.0
      %900 = vmatpush1.msra.mxu0 0.0
      %901 = vmatprep.subr.mxu0 0.0
      %902 = vmatpush1.msra.mxu0 0.0
      %903 = vmatprep.subr.mxu0 0.0
      %904 = vmatpush1.msra.mxu0 0.0
      %905 = vmatprep.subr.mxu0 0.0
      %906 = vmatpush1.msra.mxu0 0.0
      %907 = vmatprep.subr.mxu0 0.0
      %908 = vmatpush1.msra.mxu0 0.0
      %909 = vmatprep.subr.mxu0 0.0
      %910 = vmatpush1.msra.mxu0 0.0
      %911 = vmatprep.subr.mxu0 0.0
      %912 = vmatpush1.msra.mxu0 0.0
      %913 = vmatprep.subr.mxu0 0.0
      %914 = vmatpush1.msra.mxu0 0.0
      %915 = vmatprep.subr.mxu0 0.0
      %916 = vmatpush1.msra.mxu0 0.0
      %917 = vmatprep.subr.mxu0 0.0
      %918 = vmatpush1.msra.mxu0 0.0
      %919 = vmatprep.mubr.f32.mxu0 0.0
      %920 = vmatmul.mubr.f32.gmra.mrb[0].mxu0 %v853
      %v921 = vpop.f32.mrb[0].mxu0
      %v922 = vadd.f32 0.0, %v921
      %v923 = vpop.f32.mrb[0].mxu0
      %924 = vdwg.mxu0
      %v925 = vadd.f32 %v847, %v922
      %926 = vst.msk [vmem:[%s840] sm:$0xff] %vm349, %v925
      %927 = vst.msk [vmem:[%s815] sm:$0xff] %vm449, %v820
      %v928 = vld [vmem:[%s290] sm:$0xff]
      %v929 = vmul.f32 %v928, 0.17677669
      %v930 = vld [vmem:[%s302] sm:$0xff]
      %v931 = vld [vmem:[%s315] sm:$0xff]
      %933 = vrot.lane.b32.xlu0 %v929, 32
      %v934 = vpop.permute.xlu0 %933
      %936 = vrot.lane.b32.xlu0 %v930, 32
      %v937 = vpop.permute.xlu0 %936
      %v938 = vsel %vm349, %v934, 0
      %v940 = vsel %vm349, %v937, 0
      %942 = vmatprep.subr.mxu0 0.0
      %943 = vmatpush1.xpose.msra.mxu0 %v940
      %944 = vmatprep.subr.mxu0 0.0
      %945 = vmatpush1.xpose.msra.mxu0 0.0
      %946 = vmatprep.subr.mxu0 0.0
      %947 = vmatpush1.xpose.msra.mxu0 0.0
      %948 = vmatprep.subr.mxu0 0.0
      %949 = vmatpush1.xpose.msra.mxu0 0.0
      %950 = vmatprep.subr.mxu0 0.0
      %951 = vmatpush1.xpose.msra.mxu0 0.0
      %952 = vmatprep.subr.mxu0 0.0
      %953 = vmatpush1.xpose.msra.mxu0 0.0
      %954 = vmatprep.subr.mxu0 0.0
      %955 = vmatpush1.xpose.msra.mxu0 0.0
      %956 = vmatprep.subr.mxu0 0.0
      %957 = vmatpush1.xpose.msra.mxu0 0.0
      %958 = vmatprep.subr.mxu0 0.0
      %959 = vmatpush1.xpose.msra.mxu0 0.0
      %960 = vmatprep.subr.mxu0 0.0
      %961 = vmatpush1.xpose.msra.mxu0 0.0
      %962 = vmatprep.subr.mxu0 0.0
      %963 = vmatpush1.xpose.msra.mxu0 0.0
      %964 = vmatprep.subr.mxu0 0.0
      %965 = vmatpush1.xpose.msra.mxu0 0.0
      %966 = vmatprep.subr.mxu0 0.0
      %967 = vmatpush1.xpose.msra.mxu0 0.0
      %968 = vmatprep.subr.mxu0 0.0
      %969 = vmatpush1.xpose.msra.mxu0 0.0
      %970 = vmatprep.subr.mxu0 0.0
      %971 = vmatpush1.xpose.msra.mxu0 0.0
      %972 = vmatprep.subr.mxu0 0.0
      %973 = vmatpush1.xpose.msra.mxu0 0.0
      %974 = vmatprep.subr.mxu0 0.0
      %975 = vmatpush1.xpose.msra.mxu0 0.0
      %976 = vmatprep.subr.mxu0 0.0
      %977 = vmatpush1.xpose.msra.mxu0 0.0
      %978 = vmatprep.subr.mxu0 0.0
      %979 = vmatpush1.xpose.msra.mxu0 0.0
      %980 = vmatprep.subr.mxu0 0.0
      %981 = vmatpush1.xpose.msra.mxu0 0.0
      %982 = vmatprep.subr.mxu0 0.0
      %983 = vmatpush1.xpose.msra.mxu0 0.0
      %984 = vmatprep.subr.mxu0 0.0
      %985 = vmatpush1.xpose.msra.mxu0 0.0
      %986 = vmatprep.subr.mxu0 0.0
      %987 = vmatpush1.xpose.msra.mxu0 0.0
      %988 = vmatprep.subr.mxu0 0.0
      %989 = vmatpush1.xpose.msra.mxu0 0.0
      %990 = vmatprep.subr.mxu0 0.0
      %991 = vmatpush1.xpose.msra.mxu0 0.0
      %992 = vmatprep.subr.mxu0 0.0
      %993 = vmatpush1.xpose.msra.mxu0 0.0
      %994 = vmatprep.subr.mxu0 0.0
      %995 = vmatpush1.xpose.msra.mxu0 0.0
      %996 = vmatprep.subr.mxu0 0.0
      %997 = vmatpush1.xpose.msra.mxu0 0.0
      %998 = vmatprep.subr.mxu0 0.0
      %999 = vmatpush1.xpose.msra.mxu0 0.0
      %1000 = vmatprep.subr.mxu0 0.0
      %1001 = vmatpush1.xpose.msra.mxu0 0.0
      %1002 = vmatprep.subr.mxu0 0.0
      %1003 = vmatpush1.xpose.msra.mxu0 0.0
      %1004 = vmatprep.subr.mxu0 0.0
      %1005 = vmatpush1.xpose.msra.mxu0 0.0
      %1006 = vmatprep.mubr.f32.mxu0 0.0
      %1007 = vmatmul.mubr.f32.gmra.mrb[0].mxu0 %v938
      %v1008 = vpop.f32.mrb[0].mxu0
      %v1009 = vadd.f32 0.0, %v1008
      %v1010 = vpop.f32.mrb[0].mxu0
      %1011 = vdwg.mxu0
      %s1012 = scalar_lea.vmem [#allocation2], 24
      %v1013 = vld [vmem:[%s1012] sm:$0xff]
      %v1014 = vsel %vm427, %v1009, -inf
      %1015 = vmax.xlane.f32.xlu0 %v1014
      %v1016 = vpop.xlane.xlu0 %1015
      %v1017 = vmax.f32 %v1013, %v1016
      %v1018 = vsub.f32 %v1013, %v1017
      %v1019 = vmul.f32 %v1018, 1.442695
      %v1020 = vpow.pop %v1019
      %1022 = vset.pattern.permute.xlu0 0
      %1023 = vperm.xlu0 %1022, %v1017
      %v1024 = vpop.permute.xlu0 %1023
      %v1026 = vsub.f32 %v1009, %v1024
      %v1027 = vmul.f32 %v1026, 1.442695
      %v1028 = vpow.pop %v1027
      %s1029 = scalar_lea.vmem [#allocation3], 24
      %v1030 = vld [vmem:[%s1029] sm:$0xff]
      %v1031 = vmul.f32 %v1020, %v1030
      %v1032 = vsel %vm427, %v1028, 0.0
      %1033 = vadd.xlane.f32.xlu0 %v1032
      %v1034 = vpop.xlane.xlu0 %1033
      %v1035 = vadd.f32 %v1031, %v1034
      %1036 = vst.msk [vmem:[%s1029] sm:$0xff] %vm449, %v1035
      %s1037 = scalar_lea.vmem [#allocation4], 24
      %v1038 = vld [vmem:[%s1037] sm:$0xff]
      %1040 = vset.pattern.permute.xlu0 0
      %1041 = vperm.xlu0 %1040, %v1020
      %v1042 = vpop.permute.xlu0 %1041
      %v1044 = vmul.f32 %v1042, %v1038
      %1046 = vrot.lane.b32.xlu0 %v931, 32
      %v1047 = vpop.permute.xlu0 %1046
      %v1050 = vsel %vm427, %v1028, 0
      %1052 = vmatprep.subr.mxu0 0.0
      %1053 = vmatpush1.msra.mxu0 %v1047
      %1054 = vmatprep.subr.mxu0 0.0
      %1055 = vmatpush1.msra.mxu0 0.0
      %1056 = vmatprep.subr.mxu0 0.0
      %1057 = vmatpush1.msra.mxu0 0.0
      %1058 = vmatprep.subr.mxu0 0.0
      %1059 = vmatpush1.msra.mxu0 0.0
      %1060 = vmatprep.subr.mxu0 0.0
      %1061 = vmatpush1.msra.mxu0 0.0
      %1062 = vmatprep.subr.mxu0 0.0
      %1063 = vmatpush1.msra.mxu0 0.0
      %1064 = vmatprep.subr.mxu0 0.0
      %1065 = vmatpush1.msra.mxu0 0.0
      %1066 = vmatprep.subr.mxu0 0.0
      %1067 = vmatpush1.msra.mxu0 0.0
      %1068 = vmatprep.subr.mxu0 0.0
      %1069 = vmatpush1.msra.mxu0 0.0
      %1070 = vmatprep.subr.mxu0 0.0
      %1071 = vmatpush1.msra.mxu0 0.0
      %1072 = vmatprep.subr.mxu0 0.0
      %1073 = vmatpush1.msra.mxu0 0.0
      %1074 = vmatprep.subr.mxu0 0.0
      %1075 = vmatpush1.msra.mxu0 0.0
      %1076 = vmatprep.subr.mxu0 0.0
      %1077 = vmatpush1.msra.mxu0 0.0
      %1078 = vmatprep.subr.mxu0 0.0
      %1079 = vmatpush1.msra.mxu0 0.0
      %1080 = vmatprep.subr.mxu0 0.0
      %1081 = vmatpush1.msra.mxu0 0.0
      %1082 = vmatprep.subr.mxu0 0.0
      %1083 = vmatpush1.msra.mxu0 0.0
      %1084 = vmatprep.subr.mxu0 0.0
      %1085 = vmatpush1.msra.mxu0 0.0
      %1086 = vmatprep.subr.mxu0 0.0
      %1087 = vmatpush1.msra.mxu0 0.0
      %1088 = vmatprep.subr.mxu0 0.0
      %1089 = vmatpush1.msra.mxu0 0.0
      %1090 = vmatprep.subr.mxu0 0.0
      %1091 = vmatpush1.msra.mxu0 0.0
      %1092 = vmatprep.subr.mxu0 0.0
      %1093 = vmatpush1.msra.mxu0 0.0
      %1094 = vmatprep.subr.mxu0 0.0
      %1095 = vmatpush1.msra.mxu0 0.0
      %1096 = vmatprep.subr.mxu0 0.0
      %1097 = vmatpush1.msra.mxu0 0.0
      %1098 = vmatprep.subr.mxu0 0.0
      %1099 = vmatpush1.msra.mxu0 0.0
      %1100 = vmatprep.subr.mxu0 0.0
      %1101 = vmatpush1.msra.mxu0 0.0
      %1102 = vmatprep.subr.mxu0 0.0
      %1103 = vmatpush1.msra.mxu0 0.0
      %1104 = vmatprep.subr.mxu0 0.0
      %1105 = vmatpush1.msra.mxu0 0.0
      %1106 = vmatprep.subr.mxu0 0.0
      %1107 = vmatpush1.msra.mxu0 0.0
      %1108 = vmatprep.subr.mxu0 0.0
      %1109 = vmatpush1.msra.mxu0 0.0
      %1110 = vmatprep.subr.mxu0 0.0
      %1111 = vmatpush1.msra.mxu0 0.0
      %1112 = vmatprep.subr.mxu0 0.0
      %1113 = vmatpush1.msra.mxu0 0.0
      %1114 = vmatprep.subr.mxu0 0.0
      %1115 = vmatpush1.msra.mxu0 0.0
      %1116 = vmatprep.mubr.f32.mxu0 0.0
      %1117 = vmatmul.mubr.f32.gmra.mrb[0].mxu0 %v1050
      %v1118 = vpop.f32.mrb[0].mxu0
      %v1119 = vadd.f32 0.0, %v1118
      %v1120 = vpop.f32.mrb[0].mxu0
      %1121 = vdwg.mxu0
      %v1122 = vadd.f32 %v1044, %v1119
      %1123 = vst.msk [vmem:[%s1037] sm:$0xff] %vm349, %v1122
      %1124 = vst.msk [vmem:[%s1012] sm:$0xff] %vm449, %v1017
      // Predicated region
      $region37: #{attention_forward.6} parent=31 // pred_check
        %p1125 = pneg %p327
      $region38: #{attention_forward.6} parent=31 // pred_check_branch
        %1127 = sbr.rel (%p1125) target = $region40
      $region39: #{attention_forward.6} parent=31 // pred_region
        %v1128 = vld [vmem:[#allocation4] sm:$0xff]
        %v1129 = vld [vmem:[#allocation3] sm:$0xff]
        %v1130 = vrcp.pop %v1129
        %1132 = vset.pattern.permute.xlu0 0
        %1133 = vperm.xlu0 %1132, %v1130
        %v1134 = vpop.permute.xlu0 %1133
        %v1136 = vmul.f32 %v1128, %v1134
        %1137 = vst.msk [vmem:[%s326] sm:$0xff] %vm349, %v1136
        %v1138 = vld [vmem:[%s643] sm:$0xff]
        %v1139 = vld [vmem:[%s635] sm:$0xff]
        %v1140 = vrcp.pop %v1139
        %1142 = vset.pattern.permute.xlu0 0
        %1143 = vperm.xlu0 %1142, %v1140
        %v1144 = vpop.permute.xlu0 %1143
        %v1146 = vmul.f32 %v1138, %v1144
        %1148 = vrot.lane.b32.xlu0 %v1146, 32
        %v1149 = vpop.permute.xlu0 %1148
        %vm1151 = vcmask 523520
        %1152 = vst.msk [vmem:[%s326] sm:$0xff] %vm1151, %v1149
        %v1153 = vld [vmem:[%s840] sm:$0xff]
        %v1154 = vld [vmem:[%s832] sm:$0xff]
        %v1155 = vrcp.pop %v1154
        %1157 = vset.pattern.permute.xlu0 0
        %1158 = vperm.xlu0 %1157, %v1155
        %v1159 = vpop.permute.xlu0 %1158
        %v1161 = vmul.f32 %v1153, %v1159
        %1163 = vrot.lane.b32.xlu0 %v1161, 64
        %v1164 = vpop.permute.xlu0 %1163
        %vm1166 = vcmask 785920
        %1167 = vst.msk [vmem:[%s326] sm:$0xff] %vm1166, %v1164
        %v1168 = vld [vmem:[%s1037] sm:$0xff]
        %v1169 = vld [vmem:[%s1029] sm:$0xff]
        %v1170 = vrcp.pop %v1169
        %1172 = vset.pattern.permute.xlu0 0
        %1173 = vperm.xlu0 %1172, %v1170
        %v1174 = vpop.permute.xlu0 %1173
        %v1176 = vmul.f32 %v1168, %v1174
        %1178 = vrot.lane.b32.xlu0 %v1176, 96
        %v1179 = vpop.permute.xlu0 %1178
        %vm1181 = vcmask 1048320
        %1182 = vst.msk [vmem:[%s326] sm:$0xff] %vm1181, %v1179
      $region40: #{attention_forward.6} parent=31 // pred_fallthru
        _
      %p1183 = scmp.lt.s32.totalorder %s20, 1
      %s1184 = scalar_select %p1183, %s20, 1
      %p1185 = scmp.lt.s32.totalorder %s22, 0
      %s1186 = scalar_select %p1185, %s22, 0
      %p1187 = scmp.lt.s32.totalorder %s21, 0
      %s1188 = scalar_select %p1187, %s21, 0
      %s1189 = sadd.s32 %s1188, %s1186
      %s1190 = sadd.s32 %s1189, %s1184
      %s1191 = smul.addr %s1190, 8
      %s1192 = scalar_lea.vmem %s3, %s1191
      // Predicated region
      $region41: #{attention_forward.6} parent=31 // pred_check
        %p1193 = pneg %p154
      $region42: #{attention_forward.6} parent=31 // pred_check_branch
        %1195 = sbr.rel (%p1193) target = $region44
      $region43: #{attention_forward.6} parent=31 // pred_region
        _
      $region44: #{attention_forward.6} parent=31 // pred_fallthru
        _
    $region32: #{attention_forward.6} parent=5 // pred_fallthru
      _
    %p1196 = scmp.le.s32.totalorder 2, %s9
    // Predicated region
    $region45: #{attention_forward.6} parent=5 // pred_check
      %p1197 = pneg %p1196
    $region46: #{attention_forward.6} parent=5 // pred_check_branch
      %1199 = sbr.rel (%p1197) target = $region48
    $region47: #{attention_forward.6} parent=5 // pred_region
      %s1200 = ssub.s32 %s9, 2
      // Predicated region
      $region49: #{attention_forward.6} parent=47 // pred_check
        %p1201 = pneg %p160
      $region50: #{attention_forward.6} parent=47 // pred_check_branch
        %1203 = sbr.rel (%p1201) target = $region52
      $region51: #{attention_forward.6} parent=47 // pred_region
        %p1204 = scmp.lt.s32.totalorder %s24, 1
        %s1205 = scalar_select %p1204, %s24, 1
        %p1206 = scmp.lt.s32.totalorder %s26, 0
        %s1207 = scalar_select %p1206, %s26, 0
        %p1208 = scmp.lt.s32.totalorder %s25, 0
        %s1209 = scalar_select %p1208, %s25, 0
        %s1210 = sadd.s32 %s1209, %s1207
        %s1211 = sadd.s32 %s1210, %s1205
        %s1212 = smul.addr %s1211, 8
        %s1213 = scalar_lea.vmem %s3, %s1212
      $region52: #{attention_forward.6} parent=47 // pred_fallthru
        _
    $region48: #{attention_forward.6} parent=5 // pred_fallthru
      _
  $region6: #{attention_forward.6} parent=0 // loop_footer
    %s13 = sadd.s32 1, %s9
  $region7: #{attention_forward.6} parent=0 // loop_footer_branch
    %8 = sbr.rel target = $region3
  $region8: #{attention_forward.6} parent=0 // loop_exit
    _

</llo_original>
